<compile_context>
chip_gen: v6e
topology: v6e:2x2x1
jax: 0.10.0
libtpu: 0.0.40
codegen_flags: <defaults>
</compile_context>

<pallas_src>
import math
import functools

import jax
import jax.numpy as jnp
from jax import lax
from jax.experimental import pallas as pl
from jax.experimental.pallas import tpu as pltpu

NEG_INF = -1e10
EPSILON = 1e-10
_VMEM_LIMIT_BYTES = 32 * 1024 * 1024  # fits every generation incl. v7x's 64 MiB VMEM


def _flash_attn_kernel(q_ref, k_ref, v_ref, o_ref, qs_sc, m_sc, l_sc, acc_sc,
                       *, scale, mm_dtype):
    """Grid = (B, H, num_q_blocks, num_kv_blocks); kv axis (last) is the reduction axis."""
    kv = pl.program_id(3)

    @pl.when(kv == 0)
    def _():
        # Scale (and cast) Q once per Q block; reset the online-softmax accumulators.
        qs_sc[...] = (q_ref[...].astype(jnp.float32) * scale).astype(mm_dtype)
        m_sc[...] = jnp.full_like(m_sc, NEG_INF)
        l_sc[...] = jnp.zeros_like(l_sc)
        acc_sc[...] = jnp.zeros_like(acc_sc)

    q = qs_sc[...]                       # (tq, D), already scaled, matmul dtype
    k = k_ref[...].astype(mm_dtype)      # (tk, D)
    v = v_ref[...].astype(mm_dtype)      # (tk, D)

    # S = (Q * scale) @ K^T : contract last dims of both operands, f32 accumulation.
    s = lax.dot_general(q, k, (((1,), (1,)), ((), ())),
                        preferred_element_type=jnp.float32)          # (tq, tk) f32

    # Online-softmax recurrence (mathematically identical to the torch reference).
    m_prev = m_sc[...]
    m_new = jnp.maximum(m_prev, jnp.max(s, axis=-1, keepdims=True))  # (tq, 1)
    alpha = jnp.exp(m_prev - m_new)                                  # (tq, 1)
    p = jnp.exp(s - m_new)                                           # (tq, tk) f32

    l_sc[...] = alpha * l_sc[...] + jnp.sum(p, axis=-1, keepdims=True) + EPSILON
    acc_sc[...] = alpha * acc_sc[...] + jnp.dot(
        p.astype(mm_dtype), v, preferred_element_type=jnp.float32)   # (tq, D) f32
    m_sc[...] = m_new

    @pl.when(kv == pl.num_programs(3) - 1)
    def _():
        l = l_sc[...]
        inv_l = pl.reciprocal(l, approx=True)     # EUP slot (cheap)
        inv_l = inv_l * (2.0 - l * inv_l)         # one Newton step -> ~full f32 accuracy
        o_ref[...] = (acc_sc[...] * inv_l).astype(o_ref.dtype)


# ----------------------------------------------------------------------------------
# Tile selection helpers (per-generation caps, megacore evenness)
# ----------------------------------------------------------------------------------

def _device_kind():
    try:
        return jax.devices()[0].device_kind.lower()
    except Exception:
        return ""


def _default_caps():
    kind = _device_kind()
    if ("v6" in kind) or ("v7" in kind) or ("tpu7" in kind):
        return 512, 512       # tq_cap, tk_cap: 256-aligned tiles fill the 2x256^2 MXU
    # v5e / older: single vst slot, keep the f32 (tq, tk) score/p tiles smaller.
    return 512, 256


def _choose_block(length, cap):
    """Largest MXU-friendly block <= cap that divides `length` (else full extent)."""
    for cand in (512, 256, 128, 64, 32, 16, 8):
        if cand <= cap and cand <= length and length % cand == 0:
            return cand
    return length  # full-extent block is always legal


def _choose_q_block(length, cap, outer_parallel):
    tq = _choose_block(length, cap)
    # v7x megacore: with B*H == 1, prefer an even number of Q blocks so both cores
    # get balanced work along the parallel axes.
    if outer_parallel == 1:
        while (length // tq) % 2 == 1 and tq > 64:
            smaller = _choose_block(length, tq // 2)
            if smaller >= tq:
                break
            tq = smaller
    return tq


# ----------------------------------------------------------------------------------
# pallas_call wrappers
# ----------------------------------------------------------------------------------

def _cost_estimate(B, H, Lq, Lk, D, tq, itemsize):
    q_bytes = B * Lq * H * D * itemsize
    kv_bytes = 2 * B * Lk * H * D * itemsize * max(1, Lq // tq)   # K/V re-read per Q block
    o_bytes = B * Lq * H * D * itemsize
    return pl.CostEstimate(
        flops=4 * B * H * Lq * Lk * D,          # QK^T + PV
        transcendentals=B * H * Lq * Lk,        # exp of the score tile
        bytes_accessed=q_bytes + kv_bytes + o_bytes,
    )


def _common_call(kernel, out_shape, grid, in_specs, out_specs, tq, D, mm_dtype, cost):
    return pl.pallas_call(
        kernel,
        out_shape=out_shape,
        grid_spec=pltpu.PrefetchScalarGridSpec(
            num_scalar_prefetch=0,
            grid=grid,
            in_specs=in_specs,
            out_specs=out_specs,
            scratch_shapes=[
                pltpu.VMEM((tq, D), mm_dtype),      # scaled Q (matmul dtype)
                pltpu.VMEM((tq, 1), jnp.float32),   # running max m
                pltpu.VMEM((tq, 1), jnp.float32),   # running denom l
                pltpu.VMEM((tq, D), jnp.float32),   # unnormalized accumulator
            ],
        ),
        compiler_params=pltpu.CompilerParams(
            dimension_semantics=("parallel", "parallel", "parallel", "arbitrary"),
            vmem_limit_bytes=_VMEM_LIMIT_BYTES,
        ),
        cost_estimate=cost,
    )


def _flash_direct_blhd(q, k, v, *, tq, tk, mm_dtype, scale, kv_pipeline_buffers=None):
    """Direct (B, L, H, D) indexing -- no wrapper transposes, no extra HBM passes."""
    B, Lq, H, D = q.shape
    Lk = k.shape[1]
    grid = (B, H, Lq // tq, Lk // tk)
    kernel = functools.partial(_flash_attn_kernel, scale=scale, mm_dtype=mm_dtype)

    kv_kwargs = {}
    if kv_pipeline_buffers is not None:
        kv_kwargs = dict(pipeline_mode=pl.Buffered(kv_pipeline_buffers))

    in_specs = [
        pl.BlockSpec((None, tq, None, D), lambda b, h, i, j: (b, i, h, 0)),
        pl.BlockSpec((None, tk, None, D), lambda b, h, i, j: (b, j, h, 0), **kv_kwargs),
        pl.BlockSpec((None, tk, None, D), lambda b, h, i, j: (b, j, h, 0), **kv_kwargs),
    ]
    out_specs = pl.BlockSpec((None, tq, None, D), lambda b, h, i, j: (b, i, h, 0))
    cost = _cost_estimate(B, H, Lq, Lk, D, tq, q.dtype.itemsize)

    return _common_call(kernel, jax.ShapeDtypeStruct((B, Lq, H, D), q.dtype),
                        grid, in_specs, out_specs, tq, D, mm_dtype, cost)(q, k, v)


def _flash_bhld(qT, kT, vT, *, tq, tk, mm_dtype, scale, kv_pipeline_buffers=None):
    """Fallback path: classic (B, H, L, D) layout (requires wrapper transposes)."""
    B, H, Lq, D = qT.shape
    Lk = kT.shape[2]
    grid = (B, H, Lq // tq, Lk // tk)
    kernel = functools.partial(_flash_attn_kernel, scale=scale, mm_dtype=mm_dtype)

    kv_kwargs = {}
    if kv_pipeline_buffers is not None:
        kv_kwargs = dict(pipeline_mode=pl.Buffered(kv_pipeline_buffers))

    in_specs = [
        pl.BlockSpec((None, None, tq, D), lambda b, h, i, j: (b, h, i, 0)),
        pl.BlockSpec((None, None, tk, D), lambda b, h, i, j: (b, h, j, 0), **kv_kwargs),
        pl.BlockSpec((None, None, tk, D), lambda b, h, i, j: (b, h, j, 0), **kv_kwargs),
    ]
    out_specs = pl.BlockSpec((None, None, tq, D), lambda b, h, i, j: (b, h, i, 0))
    cost = _cost_estimate(B, H, Lq, Lk, D, tq, qT.dtype.itemsize)

    return _common_call(kernel, jax.ShapeDtypeStruct((B, H, Lq, D), qT.dtype),
                        grid, in_specs, out_specs, tq, D, mm_dtype, cost)(qT, kT, vT)


# ----------------------------------------------------------------------------------
# Public wrapper (mirrors FlashAttention.forward)
# ----------------------------------------------------------------------------------

def flash_attention_forward(queries, keys, values, attn_mask=None, *,
                            q_block=None, kv_block=None, matmul_dtype=None,
                            kv_pipeline_buffers=None):
    """Inputs (B, L, H, D); returns (out (B, L, H, D), None) like FlashAttention.forward."""
    if attn_mask is not None:
        # TODO(synk): masked path not implemented (reference uses rearrange(mask,'b j -> b 1 1 j'))
        raise NotImplementedError("attn_mask must be None")

    B, Lq, H, D = queries.shape
    Lk = keys.shape[1]
    scale = 1.0 / math.sqrt(D)

    in_dtype = queries.dtype
    if matmul_dtype is None:
        # MXU-native path for f32 inputs; softmax stats / accumulation stay f32.
        mm_dtype = jnp.bfloat16 if in_dtype == jnp.float32 else in_dtype
    else:
        mm_dtype = matmul_dtype

    tq_cap, tk_cap = _default_caps()
    tq = q_block if q_block is not None else _choose_q_block(Lq, tq_cap, B * H)
    tk = kv_block if kv_block is not None else _choose_block(Lk, tk_cap)
    assert Lq % tq == 0 and Lk % tk == 0, "seq lengths must divide the chosen block sizes"

    try:
        # Preferred: index the (B, L, H, D) arrays directly (no HBM transpose passes).
        out = _flash_direct_blhd(queries, keys, values, tq=tq, tk=tk,
                                 mm_dtype=mm_dtype, scale=scale,
                                 kv_pipeline_buffers=kv_pipeline_buffers)
    except Exception:
        # Fallback: classic (B, H, L, D) layout if the backend rejects the squeezed
        # second-minor block dim (costs the extra transpose passes but always lowers).
        qT = jnp.transpose(queries, (0, 2, 1, 3))
        kT = jnp.transpose(keys, (0, 2, 1, 3))
        vT = jnp.transpose(values, (0, 2, 1, 3))
        oT = _flash_bhld(qT, kT, vT, tq=tq, tk=tk, mm_dtype=mm_dtype, scale=scale,
                         kv_pipeline_buffers=kv_pipeline_buffers)
        out = jnp.transpose(oT, (0, 2, 1, 3))

    return out, None


# ----------------------------------------------------------------------------------
# Reference + self-test
# ----------------------------------------------------------------------------------

def _reference_attention(queries, keys, values):
    """Plain-JAX f32 softmax attention reference, inputs/outputs (B, L, H, D)."""
    D = queries.shape[-1]
    q = queries.astype(jnp.float32)
    k = keys.astype(jnp.float32)
    v = values.astype(jnp.float32)
    s = jnp.einsum("bihd,bjhd->bhij", q, k) / math.sqrt(D)
    p = jax.nn.softmax(s, axis=-1)
    return jnp.einsum("bhij,bjhd->bihd", p, v)


if __name__ == "__main__":
    key = jax.random.PRNGKey(0)
    B, L, H, D = 2, 128, 2, 32
    kq, kk, kval = jax.random.split(key, 3)
    queries = jax.random.normal(kq, (B, L, H, D), dtype=jnp.float32)
    keys_in = jax.random.normal(kk, (B, L, H, D), dtype=jnp.float32)
    values = jax.random.normal(kval, (B, L, H, D), dtype=jnp.float32)

    ref = _reference_attention(queries, keys_in, values)

    # Default path: direct (B, L, H, D) indexing, auto tiles, bf16 matmuls / f32 accumulation.
    out, attn = flash_attention_forward(queries, keys_in, values, attn_mask=None)
    out = jax.block_until_ready(out)
    assert out.shape == (B, L, H, D)
    assert attn is None
    assert jnp.max(jnp.abs(out - ref)) < 5e-2, "mismatch vs reference (default bf16-matmul path)"

    # Exact f32-matmul path with small tiles: exercises the multi-block online-softmax
    # recurrence and accumulator reset at tight tolerance.
    out2, _ = flash_attention_forward(queries, keys_in, values, attn_mask=None,
                                      q_block=32, kv_block=32, matmul_dtype=jnp.float32)
    out2 = jax.block_until_ready(out2)
    assert jnp.max(jnp.abs(out2 - ref)) < 1e-4, "mismatch vs reference (exact f32 path)"

    print("KERNEL_OK")
</pallas_src>

<mosaic_0001>
module attributes {stable_mosaic.version = 11 : i64} {
  func.func @_flash_attn_kernel(%arg0: i32, %arg1: i32, %arg2: i32, %arg3: i32, %arg4: memref<1x1x128x32xf32, #tpu.memory_space<vmem>>, %arg5: memref<1x1x128x32xf32, #tpu.memory_space<vmem>>, %arg6: memref<1x1x128x32xf32, #tpu.memory_space<vmem>>, %arg7: memref<1x1x128x32xf32, #tpu.memory_space<vmem>>, %arg8: memref<128x32xbf16, #tpu.memory_space<vmem>>, %arg9: memref<128x1xf32, #tpu.memory_space<vmem>>, %arg10: memref<128x1xf32, #tpu.memory_space<vmem>>, %arg11: memref<128x32xf32, #tpu.memory_space<vmem>>) attributes {dimension_semantics = [#tpu.dimension_semantics<parallel>, #tpu.dimension_semantics<parallel>, #tpu.dimension_semantics<parallel>, #tpu.dimension_semantics<arbitrary>], iteration_bounds = array<i64: 2, 2, 1, 1>, scalar_prefetch = 0 : i64, scratch_operands = 4 : i64, tpu.core_type = #tpu.core_type<tc>, window_params = [{transform_indices = @transform_0, window_bounds = array<i64: 1, 1, 128, 32>}, {transform_indices = @transform_1, window_bounds = array<i64: 1, 1, 128, 32>}, {transform_indices = @transform_2, window_bounds = array<i64: 1, 1, 128, 32>}, {transform_indices = @transform_3, window_bounds = array<i64: 1, 1, 128, 32>}]} {
    %c0_i32 = arith.constant 0 : i32
    %0 = arith.cmpi eq, %arg3, %c0_i32 : i32
    %1 = arith.extui %0 : i1 to i32
    %c0_i32_0 = arith.constant 0 : i32
    %2 = arith.cmpi ne, %1, %c0_i32_0 : i32
    scf.if %2 {
      %c0_28 = arith.constant 0 : index
      %c0_29 = arith.constant 0 : index
      %c0_30 = arith.constant 0 : index
      %c0_31 = arith.constant 0 : index
      %39 = vector.load %arg4[%c0_28, %c0_29, %c0_30, %c0_31] : memref<1x1x128x32xf32, #tpu.memory_space<vmem>>, vector<1x1x128x32xf32>
      %40 = vector.shape_cast %39 : vector<1x1x128x32xf32> to vector<128x32xf32>
      %cst_32 = arith.constant 0.176776692 : f32
      %41 = vector.broadcast %cst_32 : f32 to vector<128x32xf32>
      %42 = arith.mulf %40, %41 : vector<128x32xf32>
      %43 = arith.truncf %42 : vector<128x32xf32> to vector<128x32xbf16>
      %c0_33 = arith.constant 0 : index
      %c0_34 = arith.constant 0 : index
      %44 = vector.load %arg8[%c0_33, %c0_34] : memref<128x32xbf16, #tpu.memory_space<vmem>>, vector<128x32xbf16>
      tpu.vector_store %arg8[%c0_33, %c0_34], %43 {strides = array<i32>} : memref<128x32xbf16, #tpu.memory_space<vmem>>, vector<128x32xbf16>,
      %cst_35 = arith.constant -1.000000e+10 : f32
      %45 = vector.broadcast %cst_35 : f32 to vector<128x1xf32>
      %c0_36 = arith.constant 0 : index
      %c0_37 = arith.constant 0 : index
      %46 = vector.load %arg9[%c0_36, %c0_37] : memref<128x1xf32, #tpu.memory_space<vmem>>, vector<128x1xf32>
      tpu.vector_store %arg9[%c0_36, %c0_37], %45 {strides = array<i32>} : memref<128x1xf32, #tpu.memory_space<vmem>>, vector<128x1xf32>,
      %cst_38 = arith.constant 0.000000e+00 : f32
      %47 = vector.broadcast %cst_38 : f32 to vector<128x1xf32>
      %c0_39 = arith.constant 0 : index
      %c0_40 = arith.constant 0 : index
      %48 = vector.load %arg10[%c0_39, %c0_40] : memref<128x1xf32, #tpu.memory_space<vmem>>, vector<128x1xf32>
      tpu.vector_store %arg10[%c0_39, %c0_40], %47 {strides = array<i32>} : memref<128x1xf32, #tpu.memory_space<vmem>>, vector<128x1xf32>,
      %cst_41 = arith.constant 0.000000e+00 : f32
      %49 = vector.broadcast %cst_41 : f32 to vector<128x32xf32>
      %c0_42 = arith.constant 0 : index
      %c0_43 = arith.constant 0 : index
      %50 = vector.load %arg11[%c0_42, %c0_43] : memref<128x32xf32, #tpu.memory_space<vmem>>, vector<128x32xf32>
      tpu.vector_store %arg11[%c0_42, %c0_43], %49 {strides = array<i32>} : memref<128x32xf32, #tpu.memory_space<vmem>>, vector<128x32xf32>,
    } else {
    }
    %c0 = arith.constant 0 : index
    %c0_1 = arith.constant 0 : index
    %3 = vector.load %arg8[%c0, %c0_1] : memref<128x32xbf16, #tpu.memory_space<vmem>>, vector<128x32xbf16>
    %c0_2 = arith.constant 0 : index
    %c0_3 = arith.constant 0 : index
    %c0_4 = arith.constant 0 : index
    %c0_5 = arith.constant 0 : index
    %4 = vector.load %arg5[%c0_2, %c0_3, %c0_4, %c0_5] : memref<1x1x128x32xf32, #tpu.memory_space<vmem>>, vector<1x1x128x32xf32>
    %5 = vector.shape_cast %4 : vector<1x1x128x32xf32> to vector<128x32xf32>
    %6 = arith.truncf %5 : vector<128x32xf32> to vector<128x32xbf16>
    %c0_6 = arith.constant 0 : index
    %c0_7 = arith.constant 0 : index
    %c0_8 = arith.constant 0 : index
    %c0_9 = arith.constant 0 : index
    %7 = vector.load %arg6[%c0_6, %c0_7, %c0_8, %c0_9] : memref<1x1x128x32xf32, #tpu.memory_space<vmem>>, vector<1x1x128x32xf32>
    %8 = vector.shape_cast %7 : vector<1x1x128x32xf32> to vector<128x32xf32>
    %9 = arith.truncf %8 : vector<128x32xf32> to vector<128x32xbf16>
    %cst = arith.constant dense<0.000000e+00> : vector<128x128xf32>
    %10 = tpu.matmul %3, %6, %cst {dimension_numbers = #tpu.dot_dimension_numbers<[1], [1], [0], [0], [0, 0, 1, 0], [], []>} : vector<128x32xbf16>, vector<128x32xbf16>, vector<128x128xf32> -> vector<128x128xf32>
    %c0_10 = arith.constant 0 : index
    %c0_11 = arith.constant 0 : index
    %11 = vector.load %arg9[%c0_10, %c0_11] : memref<128x1xf32, #tpu.memory_space<vmem>>, vector<128x1xf32>
    %cst_12 = arith.constant dense<0xFF800000> : vector<128xf32>
    %12 = vector.multi_reduction <maximumf>, %10, %cst_12 [1] : vector<128x128xf32> to vector<128xf32>
    %13 = vector.shape_cast %12 : vector<128xf32> to vector<128x1xf32>
    %14 = arith.maximumf %11, %13 : vector<128x1xf32>
    %15 = arith.subf %11, %14 : vector<128x1xf32>
    %16 = math.exp %15 : vector<128x1xf32>
    %17 = vector.broadcast %14 : vector<128x1xf32> to vector<128x128xf32>
    %18 = arith.subf %10, %17 : vector<128x128xf32>
    %19 = math.exp %18 : vector<128x128xf32>
    %c0_13 = arith.constant 0 : index
    %c0_14 = arith.constant 0 : index
    %20 = vector.load %arg10[%c0_13, %c0_14] : memref<128x1xf32, #tpu.memory_space<vmem>>, vector<128x1xf32>
    %21 = arith.mulf %16, %20 : vector<128x1xf32>
    %cst_15 = arith.constant dense<0.000000e+00> : vector<128xf32>
    %22 = vector.multi_reduction <add>, %19, %cst_15 [1] : vector<128x128xf32> to vector<128xf32>
    %23 = vector.shape_cast %22 : vector<128xf32> to vector<128x1xf32>
    %24 = arith.addf %21, %23 : vector<128x1xf32>
    %cst_16 = arith.constant 1.000000e-10 : f32
    %25 = vector.broadcast %cst_16 : f32 to vector<128x1xf32>
    %26 = arith.addf %24, %25 : vector<128x1xf32>
    %c0_17 = arith.constant 0 : index
    %c0_18 = arith.constant 0 : index
    %27 = vector.load %arg10[%c0_17, %c0_18] : memref<128x1xf32, #tpu.memory_space<vmem>>, vector<128x1xf32>
    tpu.vector_store %arg10[%c0_17, %c0_18], %26 {strides = array<i32>} : memref<128x1xf32, #tpu.memory_space<vmem>>, vector<128x1xf32>,
    %c0_19 = arith.constant 0 : index
    %c0_20 = arith.constant 0 : index
    %28 = vector.load %arg11[%c0_19, %c0_20] : memref<128x32xf32, #tpu.memory_space<vmem>>, vector<128x32xf32>
    %29 = vector.broadcast %16 : vector<128x1xf32> to vector<128x32xf32>
    %30 = arith.mulf %29, %28 : vector<128x32xf32>
    %31 = arith.truncf %19 : vector<128x128xf32> to vector<128x128xbf16>
    %cst_21 = arith.constant dense<0.000000e+00> : vector<128x32xf32>
    %32 = tpu.matmul %31, %9, %cst_21 {dimension_numbers = #tpu.dot_dimension_numbers<[1], [0], [0], [1], [0, 0, 1, 1], [], []>} : vector<128x128xbf16>, vector<128x32xbf16>, vector<128x32xf32> -> vector<128x32xf32>
    %33 = arith.addf %30, %32 : vector<128x32xf32>
    %c0_22 = arith.constant 0 : index
    %c0_23 = arith.constant 0 : index
    %34 = vector.load %arg11[%c0_22, %c0_23] : memref<128x32xf32, #tpu.memory_space<vmem>>, vector<128x32xf32>
    tpu.vector_store %arg11[%c0_22, %c0_23], %33 {strides = array<i32>} : memref<128x32xf32, #tpu.memory_space<vmem>>, vector<128x32xf32>,
    %c0_24 = arith.constant 0 : index
    %c0_25 = arith.constant 0 : index
    %35 = vector.load %arg9[%c0_24, %c0_25] : memref<128x1xf32, #tpu.memory_space<vmem>>, vector<128x1xf32>
    tpu.vector_store %arg9[%c0_24, %c0_25], %14 {strides = array<i32>} : memref<128x1xf32, #tpu.memory_space<vmem>>, vector<128x1xf32>,
    %c0_i32_26 = arith.constant 0 : i32
    %36 = arith.cmpi eq, %arg3, %c0_i32_26 : i32
    %37 = arith.extui %36 : i1 to i32
    %c0_i32_27 = arith.constant 0 : i32
    %38 = arith.cmpi ne, %37, %c0_i32_27 : i32
    scf.if %38 {
      %c0_28 = arith.constant 0 : index
      %c0_29 = arith.constant 0 : index
      %39 = vector.load %arg10[%c0_28, %c0_29] : memref<128x1xf32, #tpu.memory_space<vmem>>, vector<128x1xf32>
      %40 = tpu.reciprocal %39 {approx = true} : vector<128x1xf32> -> vector<128x1xf32>
      %41 = arith.mulf %39, %40 : vector<128x1xf32>
      %cst_30 = arith.constant 2.000000e+00 : f32
      %42 = vector.broadcast %cst_30 : f32 to vector<128x1xf32>
      %43 = arith.subf %42, %41 : vector<128x1xf32>
      %44 = arith.mulf %40, %43 : vector<128x1xf32>
      %c0_31 = arith.constant 0 : index
      %c0_32 = arith.constant 0 : index
      %45 = vector.load %arg11[%c0_31, %c0_32] : memref<128x32xf32, #tpu.memory_space<vmem>>, vector<128x32xf32>
      %46 = vector.broadcast %44 : vector<128x1xf32> to vector<128x32xf32>
      %47 = arith.mulf %45, %46 : vector<128x32xf32>
      %c0_33 = arith.constant 0 : index
      %c0_34 = arith.constant 0 : index
      %c0_35 = arith.constant 0 : index
      %c0_36 = arith.constant 0 : index
      %48 = vector.load %arg7[%c0_33, %c0_34, %c0_35, %c0_36] : memref<1x1x128x32xf32, #tpu.memory_space<vmem>>, vector<1x1x128x32xf32>
      %49 = vector.shape_cast %48 : vector<1x1x128x32xf32> to vector<128x32xf32>
      %50 = vector.shape_cast %47 : vector<128x32xf32> to vector<1x1x128x32xf32>
      tpu.vector_store %arg7[%c0_33, %c0_34, %c0_35, %c0_36], %50 {strides = array<i32>} : memref<1x1x128x32xf32, #tpu.memory_space<vmem>>, vector<1x1x128x32xf32>,
    } else {
    }
    return
  }
  func.func @transform_0(%arg0: i32, %arg1: i32, %arg2: i32, %arg3: i32) -> (i32, i32, i32, i32) {
    %c0_i32 = arith.constant 0 : i32
    %c0_i32_0 = arith.constant 0 : i32
    return %arg0, %arg1, %arg2, %c0_i32 : i32, i32, i32, i32
  }
  func.func @transform_1(%arg0: i32, %arg1: i32, %arg2: i32, %arg3: i32) -> (i32, i32, i32, i32) {
    %c0_i32 = arith.constant 0 : i32
    %c0_i32_0 = arith.constant 0 : i32
    return %arg0, %arg1, %arg3, %c0_i32 : i32, i32, i32, i32
  }
  func.func @transform_2(%arg0: i32, %arg1: i32, %arg2: i32, %arg3: i32) -> (i32, i32, i32, i32) {
    %c0_i32 = arith.constant 0 : i32
    %c0_i32_0 = arith.constant 0 : i32
    return %arg0, %arg1, %arg3, %c0_i32 : i32, i32, i32, i32
  }
  func.func @transform_3(%arg0: i32, %arg1: i32, %arg2: i32, %arg3: i32) -> (i32, i32, i32, i32) {
    %c0_i32 = arith.constant 0 : i32
    %c0_i32_0 = arith.constant 0 : i32
    return %arg0, %arg1, %arg2, %c0_i32 : i32, i32, i32, i32
  }
}

</mosaic_0001>

<llo_original>
// kernel: tpu_custom_call.1
$region0: #{tpu_custom_call.1}
  #allocation0 [shape = 'u32[]', space=smem, size = 0x4, offset = 0x4, fixed_abs, tag = 'smem constant byte address 0x4 - core index']
  #allocation1 [shape = 'u32[144,128]{1,0:T(1,128)}', space=vmem, size = 0x12000, scoped, tag = 'internal scratch']
  #allocation2 [shape = 'bf16[128,32]{1,0:T(8,128)(2,1)}', space=vmem, size = 0x8000, scoped, tag = 'scratch operand']
  #allocation3 [shape = 'f32[128,1]{1,0:T(8,128)}', space=vmem, size = 0x10000, scoped, tag = 'scratch operand']
  #allocation4 [shape = 'f32[128,1]{1,0:T(8,128)}', space=vmem, size = 0x10000, scoped, tag = 'scratch operand']
  #allocation5 [shape = 'f32[128,32]{1,0:T(8,128)}', space=vmem, size = 0x10000, scoped, tag = 'scratch operand']
  %s0 = inlined_call_operand.vmem [shape: f32[2,2,128,32], index: 0, kind: input, shape index: {}]
  %s1 = inlined_call_operand.vmem [shape: f32[2,2,128,32], index: 1, kind: input, shape index: {}]
  %s2 = inlined_call_operand.vmem [shape: f32[2,2,128,32], index: 2, kind: input, shape index: {}]
  %s3 = inlined_call_operand.vmem [shape: f32[2,2,128,32], index: 3, kind: output, shape index: {}]
  %s4 = sld [smem:[#allocation0]]
  $region53: #{tpu_custom_call.1} parent=0
    _
  %s6 = ssub.s32 1, %s4
  %s7 = scalar_select 0, %s6, %s4
  loop: start=0, step=1, limit=6
  $region2: #{tpu_custom_call.1} parent=0 // loop_pre_header
    _
  $region3: #{tpu_custom_call.1} parent=0 // loop_header
    %s9 = sphi 0, %s13
    %p10 = scmp.ge.s32.totalorder %s9, 6
    %s16 = sphi 0, %s42
    %s17 = sphi 0, %s38
    %s18 = sphi 0, %s34
    %s19 = sphi 0, %s30
    %s20 = sphi 0, %s16
    %s21 = sphi 0, %s17
    %s22 = sphi 0, %s18
    %s23 = sphi 0, %s19
    %s24 = sphi 0, %s20
    %s25 = sphi 0, %s21
    %s26 = sphi 0, %s22
    %s27 = sphi 0, %s23
    %s49 = sphi 0, %s51
    %s52 = sphi 0, %s49
    %s53 = sphi 0, %s52
    %s69 = sphi 0, %s53
    %s79 = sphi 0, %s81
    %s82 = sphi 0, %s79
    %s83 = sphi 0, %s82
    %s99 = sphi 0, %s83
    %s109 = sphi 0, %s111
    %s112 = sphi 0, %s109
    %s113 = sphi 0, %s112
    %s129 = sphi 0, %s113
    %s139 = sphi 0, %s141
    %s142 = sphi 0, %s139
    %s143 = sphi 0, %s142
    %s159 = sphi 0, %s143
  $region4: #{tpu_custom_call.1} parent=0 // loop_header_branch
    %12 = sbr.rel (%p10) target = $region8
  $region5: #{tpu_custom_call.1} parent=0 // loop_body
    %s14 = ssub.s32 %s9, 1
    %s15 = ssub.s32 %s9, 2
    %s28 = sadd.s32 1, %s19
    %p29 = scmp.ge.s32.totalorder %s28, 1
    %s30 = scalar_select %p29, 0, %s28
    %s31 = sadd.s32 1, %s18
    %s32 = scalar_select %p29, %s31, %s18
    %p33 = scmp.ge.s32.totalorder %s32, 1
    %s34 = scalar_select %p33, 0, %s32
    %s35 = sadd.s32 1, %s17
    %s36 = scalar_select %p33, %s35, %s17
    %p37 = scmp.ge.s32.totalorder %s36, 2
    %s38 = scalar_select %p37, 0, %s36
    %s39 = sadd.s32 1, %s16
    %s40 = scalar_select %p37, %s39, %s16
    %p41 = scmp.ge.s32.totalorder %s40, 2
    %s42 = scalar_select %p41, 0, %s40
    %s43 = ssub.s32 %s16, %s42
    %s44 = ssub.s32 %s17, %s38
    %s45 = sor.u32 %s43, %s44
    %s46 = ssub.s32 %s18, %s34
    %s47 = sor.u32 %s45, %s46
    %p48 = scmp.eq.s32.totalorder %s47, 0
    %s50 = sadd.s32 %s49, 1
    %s51 = scalar_select %p48, %s49, %s50
    %p54 = pneg %p48
    %p55 = scmp.eq.s32.totalorder %s9, 3
    %p56 = por %p54, %p55
    %p57 = scmp.ne.s32.totalorder %s49, %s52
    %p58 = scmp.eq.s32.totalorder %s9, 0
    %p59 = por %p57, %p58
    %p60 = scmp.ne.s32.totalorder %s49, %s52
    %p61 = scmp.eq.s32.totalorder %s14, 3
    %p62 = por %p60, %p61
    %p63 = scmp.ne.s32.totalorder %s52, %s53
    %p64 = scmp.eq.s32.totalorder %s14, 0
    %p65 = por %p63, %p64
    %p66 = scmp.ne.s32.totalorder %s52, %s53
    %p67 = scmp.eq.s32.totalorder %s15, 3
    %p68 = por %p66, %p67
    %p70 = scmp.ne.s32.totalorder %s53, %s69
    %p71 = scmp.eq.s32.totalorder %s15, 0
    %p72 = por %p70, %p71
    %s73 = ssub.s32 %s16, %s42
    %s74 = ssub.s32 %s17, %s38
    %s75 = sor.u32 %s73, %s74
    %s76 = ssub.s32 %s19, %s30
    %s77 = sor.u32 %s75, %s76
    %p78 = scmp.eq.s32.totalorder %s77, 0
    %s80 = sadd.s32 %s79, 1
    %s81 = scalar_select %p78, %s79, %s80
    %p84 = pneg %p78
    %p85 = scmp.eq.s32.totalorder %s9, 3
    %p86 = por %p84, %p85
    %p87 = scmp.ne.s32.totalorder %s79, %s82
    %p88 = scmp.eq.s32.totalorder %s9, 0
    %p89 = por %p87, %p88
    %p90 = scmp.ne.s32.totalorder %s79, %s82
    %p91 = scmp.eq.s32.totalorder %s14, 3
    %p92 = por %p90, %p91
    %p93 = scmp.ne.s32.totalorder %s82, %s83
    %p94 = scmp.eq.s32.totalorder %s14, 0
    %p95 = por %p93, %p94
    %p96 = scmp.ne.s32.totalorder %s82, %s83
    %p97 = scmp.eq.s32.totalorder %s15, 3
    %p98 = por %p96, %p97
    %p100 = scmp.ne.s32.totalorder %s83, %s99
    %p101 = scmp.eq.s32.totalorder %s15, 0
    %p102 = por %p100, %p101
    %s103 = ssub.s32 %s16, %s42
    %s104 = ssub.s32 %s17, %s38
    %s105 = sor.u32 %s103, %s104
    %s106 = ssub.s32 %s19, %s30
    %s107 = sor.u32 %s105, %s106
    %p108 = scmp.eq.s32.totalorder %s107, 0
    %s110 = sadd.s32 %s109, 1
    %s111 = scalar_select %p108, %s109, %s110
    %p114 = pneg %p108
    %p115 = scmp.eq.s32.totalorder %s9, 3
    %p116 = por %p114, %p115
    %p117 = scmp.ne.s32.totalorder %s109, %s112
    %p118 = scmp.eq.s32.totalorder %s9, 0
    %p119 = por %p117, %p118
    %p120 = scmp.ne.s32.totalorder %s109, %s112
    %p121 = scmp.eq.s32.totalorder %s14, 3
    %p122 = por %p120, %p121
    %p123 = scmp.ne.s32.totalorder %s112, %s113
    %p124 = scmp.eq.s32.totalorder %s14, 0
    %p125 = por %p123, %p124
    %p126 = scmp.ne.s32.totalorder %s112, %s113
    %p127 = scmp.eq.s32.totalorder %s15, 3
    %p128 = por %p126, %p127
    %p130 = scmp.ne.s32.totalorder %s113, %s129
    %p131 = scmp.eq.s32.totalorder %s15, 0
    %p132 = por %p130, %p131
    %s133 = ssub.s32 %s16, %s42
    %s134 = ssub.s32 %s17, %s38
    %s135 = sor.u32 %s133, %s134
    %s136 = ssub.s32 %s18, %s34
    %s137 = sor.u32 %s135, %s136
    %p138 = scmp.eq.s32.totalorder %s137, 0
    %s140 = sadd.s32 %s139, 1
    %s141 = scalar_select %p138, %s139, %s140
    %p144 = pneg %p138
    %p145 = scmp.eq.s32.totalorder %s9, 3
    %p146 = por %p144, %p145
    %p147 = scmp.ne.s32.totalorder %s139, %s142
    %p148 = scmp.eq.s32.totalorder %s9, 0
    %p149 = por %p147, %p148
    %p150 = scmp.ne.s32.totalorder %s139, %s142
    %p151 = scmp.eq.s32.totalorder %s14, 3
    %p152 = por %p150, %p151
    %p153 = scmp.ne.s32.totalorder %s142, %s143
    %p154 = scmp.eq.s32.totalorder %s14, 0
    %p155 = por %p153, %p154
    %p156 = scmp.ne.s32.totalorder %s142, %s143
    %p157 = scmp.eq.s32.totalorder %s15, 3
    %p158 = por %p156, %p157
    %p160 = scmp.ne.s32.totalorder %s143, %s159
    %p161 = scmp.eq.s32.totalorder %s15, 0
    %p162 = por %p160, %p161
    %p163 = scmp.le.s32.totalorder 1, %s9
    %p164 = scmp.lt.s32.totalorder %s9, 5
    %p165 = pnand %p163, %p164
    %p166 = pneg %p165
    // Predicated region
    $region9: #{tpu_custom_call.1} parent=5 // pred_check
      _
    $region10: #{tpu_custom_call.1} parent=5 // pred_check_branch
      %168 = sbr.rel (%p165) target = $region12
    $region11: #{tpu_custom_call.1} parent=5 // pred_region
      %s169 = ssub.s32 %s9, 1
    $region12: #{tpu_custom_call.1} parent=5 // pred_fallthru
      _
    %p170 = scmp.lt.s32.totalorder %s9, 4
    // Predicated region
    $region13: #{tpu_custom_call.1} parent=5 // pred_check
      %p171 = pneg %p170
    $region14: #{tpu_custom_call.1} parent=5 // pred_check_branch
      %173 = sbr.rel (%p171) target = $region16
    $region15: #{tpu_custom_call.1} parent=5 // pred_region
      // Predicated region
      $region17: #{tpu_custom_call.1} parent=15 // pred_check
        %p174 = pneg %p59
      $region18: #{tpu_custom_call.1} parent=15 // pred_check_branch
        %176 = sbr.rel (%p174) target = $region20
      $region19: #{tpu_custom_call.1} parent=15 // pred_region
        %s177 = smul.u32 16, %s18
        %p178 = scmp.lt.s32.totalorder %s16, 1
        %s179 = scalar_select %p178, %s16, 1
        %p180 = scmp.lt.s32.totalorder %s17, 1
        %s181 = scalar_select %p180, %s17, 1
        %p182 = scmp.lt.s32.totalorder %s177, 15
        %s183 = scalar_select %p182, %s177, 15
        %s184 = smul.addr %s181, 16
        %s185 = sadd.s32 %s183, %s184
        %s186 = smul.addr %s179, 32
        %s187 = sadd.s32 %s185, %s186
        %s188 = smul.addr %s187, 8
        %s189 = scalar_lea.vmem %s0, %s188
        %s190 = smul.u32 16, %s18
      $region20: #{tpu_custom_call.1} parent=15 // pred_fallthru
        _
      // Predicated region
      $region21: #{tpu_custom_call.1} parent=15 // pred_check
        %p191 = pneg %p89
      $region22: #{tpu_custom_call.1} parent=15 // pred_check_branch
        %193 = sbr.rel (%p191) target = $region24
      $region23: #{tpu_custom_call.1} parent=15 // pred_region
        %s194 = smul.u32 16, %s19
        %p195 = scmp.lt.s32.totalorder %s16, 1
        %s196 = scalar_select %p195, %s16, 1
        %p197 = scmp.lt.s32.totalorder %s17, 1
        %s198 = scalar_select %p197, %s17, 1
        %p199 = scmp.lt.s32.totalorder %s194, 15
        %s200 = scalar_select %p199, %s194, 15
        %s201 = smul.addr %s198, 16
        %s202 = sadd.s32 %s200, %s201
        %s203 = smul.addr %s196, 32
        %s204 = sadd.s32 %s202, %s203
        %s205 = smul.addr %s204, 8
        %s206 = scalar_lea.vmem %s1, %s205
        %s207 = smul.u32 16, %s19
      $region24: #{tpu_custom_call.1} parent=15 // pred_fallthru
        _
      // Predicated region
      $region25: #{tpu_custom_call.1} parent=15 // pred_check
        %p208 = pneg %p119
      $region26: #{tpu_custom_call.1} parent=15 // pred_check_branch
        %210 = sbr.rel (%p208) target = $region28
      $region27: #{tpu_custom_call.1} parent=15 // pred_region
        %s211 = smul.u32 16, %s19
        %p212 = scmp.lt.s32.totalorder %s16, 1
        %s213 = scalar_select %p212, %s16, 1
        %p214 = scmp.lt.s32.totalorder %s17, 1
        %s215 = scalar_select %p214, %s17, 1
        %p216 = scmp.lt.s32.totalorder %s211, 15
        %s217 = scalar_select %p216, %s211, 15
        %s218 = smul.addr %s215, 16
        %s219 = sadd.s32 %s217, %s218
        %s220 = smul.addr %s213, 32
        %s221 = sadd.s32 %s219, %s220
        %s222 = smul.addr %s221, 8
        %s223 = scalar_lea.vmem %s2, %s222
        %s224 = smul.u32 16, %s19
      $region28: #{tpu_custom_call.1} parent=15 // pred_fallthru
        _
    $region16: #{tpu_custom_call.1} parent=5 // pred_fallthru
      _
    %p225 = scmp.le.s32.totalorder 1, %s9
    %p226 = scmp.lt.s32.totalorder %s9, 5
    %p227 = pnand %p225, %p226
    %p228 = pneg %p227
    // Predicated region
    $region29: #{tpu_custom_call.1} parent=5 // pred_check
      _
    $region30: #{tpu_custom_call.1} parent=5 // pred_check_branch
      %230 = sbr.rel (%p227) target = $region32
    $region31: #{tpu_custom_call.1} parent=5 // pred_region
      %s231 = ssub.s32 %s9, 1
      %s232 = smul.u32 16, %s22
      %p233 = scmp.lt.s32.totalorder %s20, 1
      %s234 = scalar_select %p233, %s20, 1
      %p235 = scmp.lt.s32.totalorder %s21, 1
      %s236 = scalar_select %p235, %s21, 1
      %p237 = scmp.lt.s32.totalorder %s232, 15
      %s238 = scalar_select %p237, %s232, 15
      %s239 = smul.addr %s236, 16
      %s240 = sadd.s32 %s238, %s239
      %s241 = smul.addr %s234, 32
      %s242 = sadd.s32 %s240, %s241
      %s243 = smul.addr %s242, 8
      %s244 = scalar_lea.vmem %s0, %s243
      %p245 = pneg %p65
      %p246 = pneg %p62
      %s247 = smul.u32 16, %s23
      %p248 = scmp.lt.s32.totalorder %s20, 1
      %s249 = scalar_select %p248, %s20, 1
      %p250 = scmp.lt.s32.totalorder %s21, 1
      %s251 = scalar_select %p250, %s21, 1
      %p252 = scmp.lt.s32.totalorder %s247, 15
      %s253 = scalar_select %p252, %s247, 15
      %s254 = smul.addr %s251, 16
      %s255 = sadd.s32 %s253, %s254
      %s256 = smul.addr %s249, 32
      %s257 = sadd.s32 %s255, %s256
      %s258 = smul.addr %s257, 8
      %s259 = scalar_lea.vmem %s1, %s258
      %p260 = pneg %p95
      %p261 = pneg %p92
      %s262 = smul.u32 16, %s23
      %p263 = scmp.lt.s32.totalorder %s20, 1
      %s264 = scalar_select %p263, %s20, 1
      %p265 = scmp.lt.s32.totalorder %s21, 1
      %s266 = scalar_select %p265, %s21, 1
      %p267 = scmp.lt.s32.totalorder %s262, 15
      %s268 = scalar_select %p267, %s262, 15
      %s269 = smul.addr %s266, 16
      %s270 = sadd.s32 %s268, %s269
      %s271 = smul.addr %s264, 32
      %s272 = sadd.s32 %s270, %s271
      %s273 = smul.addr %s272, 8
      %s274 = scalar_lea.vmem %s2, %s273
      %p275 = pneg %p125
      %p276 = pneg %p122
      %p277 = pneg %p155
      %p278 = pneg %p152
      %s279 = smul.u32 16, %s22
      %p280 = scmp.lt.s32.totalorder %s20, 1
      %s281 = scalar_select %p280, %s20, 1
      %p282 = scmp.lt.s32.totalorder %s21, 1
      %s283 = scalar_select %p282, %s21, 1
      %p284 = scmp.lt.s32.totalorder %s279, 15
      %s285 = scalar_select %p284, %s279, 15
      %s286 = smul.addr %s283, 16
      %s287 = sadd.s32 %s285, %s286
      %s288 = smul.addr %s281, 32
      %s289 = sadd.s32 %s287, %s288
      %s290 = smul.addr %s289, 8
      %s291 = scalar_lea.vmem %s3, %s290
      %s292 = smul.u32 16, %s22
      %p293 = scmp.lt.s32.totalorder %s20, 1
      %s294 = scalar_select %p293, %s20, 1
      %p295 = scmp.lt.s32.totalorder %s21, 1
      %s296 = scalar_select %p295, %s21, 1
      %p297 = scmp.lt.s32.totalorder %s292, 15
      %s298 = scalar_select %p297, %s292, 15
      %s299 = smul.addr %s296, 16
      %s300 = sadd.s32 %s298, %s299
      %s301 = smul.addr %s294, 32
      %s302 = sadd.s32 %s300, %s301
      %s303 = smul.addr %s302, 8
      %s304 = scalar_lea.vmem %s0, %s303
      %s305 = smul.u32 16, %s22
      %s306 = smul.u32 16, %s23
      %p307 = scmp.lt.s32.totalorder %s20, 1
      %s308 = scalar_select %p307, %s20, 1
      %p309 = scmp.lt.s32.totalorder %s21, 1
      %s310 = scalar_select %p309, %s21, 1
      %p311 = scmp.lt.s32.totalorder %s306, 15
      %s312 = scalar_select %p311, %s306, 15
      %s313 = smul.addr %s310, 16
      %s314 = sadd.s32 %s312, %s313
      %s315 = smul.addr %s308, 32
      %s316 = sadd.s32 %s314, %s315
      %s317 = smul.addr %s316, 8
      %s318 = scalar_lea.vmem %s1, %s317
      %s319 = smul.u32 16, %s23
      %s320 = smul.u32 16, %s23
      %p321 = scmp.lt.s32.totalorder %s20, 1
      %s322 = scalar_select %p321, %s20, 1
      %p323 = scmp.lt.s32.totalorder %s21, 1
      %s324 = scalar_select %p323, %s21, 1
      %p325 = scmp.lt.s32.totalorder %s320, 15
      %s326 = scalar_select %p325, %s320, 15
      %s327 = smul.addr %s324, 16
      %s328 = sadd.s32 %s326, %s327
      %s329 = smul.addr %s322, 32
      %s330 = sadd.s32 %s328, %s329
      %s331 = smul.addr %s330, 8
      %s332 = scalar_lea.vmem %s2, %s331
      %s333 = smul.u32 16, %s23
      %s334 = smul.u32 16, %s22
      %p335 = scmp.lt.s32.totalorder %s20, 1
      %s336 = scalar_select %p335, %s20, 1
      %p337 = scmp.lt.s32.totalorder %s21, 1
      %s338 = scalar_select %p337, %s21, 1
      %p339 = scmp.lt.s32.totalorder %s334, 15
      %s340 = scalar_select %p339, %s334, 15
      %s341 = smul.addr %s338, 16
      %s342 = sadd.s32 %s340, %s341
      %s343 = smul.addr %s336, 32
      %s344 = sadd.s32 %s342, %s343
      %s345 = smul.addr %s344, 8
      %s346 = scalar_lea.vmem %s3, %s345
      %s347 = smul.u32 16, %s22
      %p349 = scmp.eq.s32.totalorder %s23, 0
      // Predicated region
      $region33: #{tpu_custom_call.1} parent=31 // pred_check
        %p350 = pneg %p349
      $region34: #{tpu_custom_call.1} parent=31 // pred_check_branch
        %352 = sbr.rel (%p350) target = $region36
      $region35: #{tpu_custom_call.1} parent=31 // pred_region
        %v353 = vld [vmem:[%s304] sm:$0xff]
        %v354 = vld [vmem:[%s304 + $0x8] sm:$0xff]
        %v355 = vld [vmem:[%s304 + $0x10] sm:$0xff]
        %v356 = vld [vmem:[%s304 + $0x18] sm:$0xff]
        %v357 = vld [vmem:[%s304 + $0x20] sm:$0xff]
        %v358 = vld [vmem:[%s304 + $0x28] sm:$0xff]
        %v359 = vld [vmem:[%s304 + $0x30] sm:$0xff]
        %v360 = vld [vmem:[%s304 + $0x38] sm:$0xff]
        %v361 = vld [vmem:[%s304 + $0x40] sm:$0xff]
        %v362 = vld [vmem:[%s304 + $0x48] sm:$0xff]
        %v363 = vld [vmem:[%s304 + $0x50] sm:$0xff]
        %v364 = vld [vmem:[%s304 + $0x58] sm:$0xff]
        %v365 = vld [vmem:[%s304 + $0x60] sm:$0xff]
        %v366 = vld [vmem:[%s304 + $0x68] sm:$0xff]
        %v367 = vld [vmem:[%s304 + $0x70] sm:$0xff]
        %v368 = vld [vmem:[%s304 + $0x78] sm:$0xff]
        %v369 = vmul.f32 %v353, 0.17677669
        %v370 = vmul.f32 %v354, 0.17677669
        %v371 = vmul.f32 %v355, 0.17677669
        %v372 = vmul.f32 %v356, 0.17677669
        %v373 = vmul.f32 %v357, 0.17677669
        %v374 = vmul.f32 %v358, 0.17677669
        %v375 = vmul.f32 %v359, 0.17677669
        %v376 = vmul.f32 %v360, 0.17677669
        %v377 = vmul.f32 %v361, 0.17677669
        %v378 = vmul.f32 %v362, 0.17677669
        %v379 = vmul.f32 %v363, 0.17677669
        %v380 = vmul.f32 %v364, 0.17677669
        %v381 = vmul.f32 %v365, 0.17677669
        %v382 = vmul.f32 %v366, 0.17677669
        %v383 = vmul.f32 %v367, 0.17677669
        %v384 = vmul.f32 %v368, 0.17677669
        %v385 = vpack.c.bf16 %v370, %v369
        %v386 = vpack.c.bf16 %v372, %v371
        %v387 = vpack.c.bf16 %v374, %v373
        %v388 = vpack.c.bf16 %v376, %v375
        %v389 = vpack.c.bf16 %v378, %v377
        %v390 = vpack.c.bf16 %v380, %v379
        %v391 = vpack.c.bf16 %v382, %v381
        %v392 = vpack.c.bf16 %v384, %v383
        %v401 = vunpack.c.l.b16 %v385
        %v402 = vunpack.c.h.b16 %v385
        %v403 = vunpack.c.l.b16 %v386
        %v404 = vunpack.c.h.b16 %v386
        %v405 = vunpack.c.l.b16 %v387
        %v406 = vunpack.c.h.b16 %v387
        %v407 = vunpack.c.l.b16 %v388
        %v408 = vunpack.c.h.b16 %v388
        %v409 = vunpack.c.l.b16 %v389
        %v410 = vunpack.c.h.b16 %v389
        %v411 = vunpack.c.l.b16 %v390
        %v412 = vunpack.c.h.b16 %v390
        %v413 = vunpack.c.l.b16 %v391
        %v414 = vunpack.c.h.b16 %v391
        %v415 = vunpack.c.l.b16 %v392
        %v416 = vunpack.c.h.b16 %v392
        %v417 = vpack.c.b16 %v401, %v401
        %v418 = vpack.c.b16 %v402, %v402
        %v419 = vpack.c.b16 %v403, %v403
        %v420 = vpack.c.b16 %v404, %v404
        %v421 = vpack.c.b16 %v405, %v405
        %v422 = vpack.c.b16 %v406, %v406
        %v423 = vpack.c.b16 %v407, %v407
        %v424 = vpack.c.b16 %v408, %v408
        %v425 = vpack.c.b16 %v409, %v409
        %v426 = vpack.c.b16 %v410, %v410
        %v427 = vpack.c.b16 %v411, %v411
        %v428 = vpack.c.b16 %v412, %v412
        %v429 = vpack.c.b16 %v413, %v413
        %v430 = vpack.c.b16 %v414, %v414
        %v431 = vpack.c.b16 %v415, %v415
        %v432 = vpack.c.b16 %v416, %v416
        %vm449 = vcmask 257024
        %450 = vst.msk [vmem:[#allocation2] sm:$0xf] %vm449, %v417
        %451 = vst.msk [vmem:[#allocation2 + $0x4] sm:$0xf] %vm449, %v418
        %452 = vst.msk [vmem:[#allocation2 + $0x8] sm:$0xf] %vm449, %v419
        %453 = vst.msk [vmem:[#allocation2 + $0xc] sm:$0xf] %vm449, %v420
        %454 = vst.msk [vmem:[#allocation2 + $0x10] sm:$0xf] %vm449, %v421
        %455 = vst.msk [vmem:[#allocation2 + $0x14] sm:$0xf] %vm449, %v422
        %456 = vst.msk [vmem:[#allocation2 + $0x18] sm:$0xf] %vm449, %v423
        %457 = vst.msk [vmem:[#allocation2 + $0x1c] sm:$0xf] %vm449, %v424
        %458 = vst.msk [vmem:[#allocation2 + $0x20] sm:$0xf] %vm449, %v425
        %459 = vst.msk [vmem:[#allocation2 + $0x24] sm:$0xf] %vm449, %v426
        %460 = vst.msk [vmem:[#allocation2 + $0x28] sm:$0xf] %vm449, %v427
        %461 = vst.msk [vmem:[#allocation2 + $0x2c] sm:$0xf] %vm449, %v428
        %462 = vst.msk [vmem:[#allocation2 + $0x30] sm:$0xf] %vm449, %v429
        %463 = vst.msk [vmem:[#allocation2 + $0x34] sm:$0xf] %vm449, %v430
        %464 = vst.msk [vmem:[#allocation2 + $0x38] sm:$0xf] %vm449, %v431
        %465 = vst.msk [vmem:[#allocation2 + $0x3c] sm:$0xf] %vm449, %v432
        %vm466 = vcmask 7168
        %467 = vst.msk [vmem:[#allocation3] sm:$0xff] %vm466, -1e+10
        %468 = vst.msk [vmem:[#allocation3 + $0x8] sm:$0xff] %vm466, -1e+10
        %469 = vst.msk [vmem:[#allocation3 + $0x10] sm:$0xff] %vm466, -1e+10
        %470 = vst.msk [vmem:[#allocation3 + $0x18] sm:$0xff] %vm466, -1e+10
        %471 = vst.msk [vmem:[#allocation3 + $0x20] sm:$0xff] %vm466, -1e+10
        %472 = vst.msk [vmem:[#allocation3 + $0x28] sm:$0xff] %vm466, -1e+10
        %473 = vst.msk [vmem:[#allocation3 + $0x30] sm:$0xff] %vm466, -1e+10
        %474 = vst.msk [vmem:[#allocation3 + $0x38] sm:$0xff] %vm466, -1e+10
        %475 = vst.msk [vmem:[#allocation3 + $0x40] sm:$0xff] %vm466, -1e+10
        %476 = vst.msk [vmem:[#allocation3 + $0x48] sm:$0xff] %vm466, -1e+10
        %477 = vst.msk [vmem:[#allocation3 + $0x50] sm:$0xff] %vm466, -1e+10
        %478 = vst.msk [vmem:[#allocation3 + $0x58] sm:$0xff] %vm466, -1e+10
        %479 = vst.msk [vmem:[#allocation3 + $0x60] sm:$0xff] %vm466, -1e+10
        %480 = vst.msk [vmem:[#allocation3 + $0x68] sm:$0xff] %vm466, -1e+10
        %481 = vst.msk [vmem:[#allocation3 + $0x70] sm:$0xff] %vm466, -1e+10
        %482 = vst.msk [vmem:[#allocation3 + $0x78] sm:$0xff] %vm466, -1e+10
        %483 = vst.msk [vmem:[#allocation4] sm:$0xff] %vm466, 0.0
        %484 = vst.msk [vmem:[#allocation4 + $0x8] sm:$0xff] %vm466, 0.0
        %485 = vst.msk [vmem:[#allocation4 + $0x10] sm:$0xff] %vm466, 0.0
        %486 = vst.msk [vmem:[#allocation4 + $0x18] sm:$0xff] %vm466, 0.0
        %487 = vst.msk [vmem:[#allocation4 + $0x20] sm:$0xff] %vm466, 0.0
        %488 = vst.msk [vmem:[#allocation4 + $0x28] sm:$0xff] %vm466, 0.0
        %489 = vst.msk [vmem:[#allocation4 + $0x30] sm:$0xff] %vm466, 0.0
        %490 = vst.msk [vmem:[#allocation4 + $0x38] sm:$0xff] %vm466, 0.0
        %491 = vst.msk [vmem:[#allocation4 + $0x40] sm:$0xff] %vm466, 0.0
        %492 = vst.msk [vmem:[#allocation4 + $0x48] sm:$0xff] %vm466, 0.0
        %493 = vst.msk [vmem:[#allocation4 + $0x50] sm:$0xff] %vm466, 0.0
        %494 = vst.msk [vmem:[#allocation4 + $0x58] sm:$0xff] %vm466, 0.0
        %495 = vst.msk [vmem:[#allocation4 + $0x60] sm:$0xff] %vm466, 0.0
        %496 = vst.msk [vmem:[#allocation4 + $0x68] sm:$0xff] %vm466, 0.0
        %497 = vst.msk [vmem:[#allocation4 + $0x70] sm:$0xff] %vm466, 0.0
        %498 = vst.msk [vmem:[#allocation4 + $0x78] sm:$0xff] %vm466, 0.0
        %vm499 = vcmask 261120
        %500 = vst.msk [vmem:[#allocation5] sm:$0xff] %vm499, 0.0
        %501 = vst.msk [vmem:[#allocation5 + $0x8] sm:$0xff] %vm499, 0.0
        %502 = vst.msk [vmem:[#allocation5 + $0x10] sm:$0xff] %vm499, 0.0
        %503 = vst.msk [vmem:[#allocation5 + $0x18] sm:$0xff] %vm499, 0.0
        %504 = vst.msk [vmem:[#allocation5 + $0x20] sm:$0xff] %vm499, 0.0
        %505 = vst.msk [vmem:[#allocation5 + $0x28] sm:$0xff] %vm499, 0.0
        %506 = vst.msk [vmem:[#allocation5 + $0x30] sm:$0xff] %vm499, 0.0
        %507 = vst.msk [vmem:[#allocation5 + $0x38] sm:$0xff] %vm499, 0.0
        %508 = vst.msk [vmem:[#allocation5 + $0x40] sm:$0xff] %vm499, 0.0
        %509 = vst.msk [vmem:[#allocation5 + $0x48] sm:$0xff] %vm499, 0.0
        %510 = vst.msk [vmem:[#allocation5 + $0x50] sm:$0xff] %vm499, 0.0
        %511 = vst.msk [vmem:[#allocation5 + $0x58] sm:$0xff] %vm499, 0.0
        %512 = vst.msk [vmem:[#allocation5 + $0x60] sm:$0xff] %vm499, 0.0
        %513 = vst.msk [vmem:[#allocation5 + $0x68] sm:$0xff] %vm499, 0.0
        %514 = vst.msk [vmem:[#allocation5 + $0x70] sm:$0xff] %vm499, 0.0
        %515 = vst.msk [vmem:[#allocation5 + $0x78] sm:$0xff] %vm499, 0.0
      $region36: #{tpu_custom_call.1} parent=31 // pred_fallthru
        _
      %v516 = vld [vmem:[#allocation2] sm:$0xf]
      %v517 = vld [vmem:[#allocation2 + $0x4] sm:$0xf]
      %v518 = vld [vmem:[#allocation2 + $0x8] sm:$0xf]
      %v519 = vld [vmem:[#allocation2 + $0xc] sm:$0xf]
      %v520 = vld [vmem:[#allocation2 + $0x10] sm:$0xf]
      %v521 = vld [vmem:[#allocation2 + $0x14] sm:$0xf]
      %v522 = vld [vmem:[#allocation2 + $0x18] sm:$0xf]
      %v523 = vld [vmem:[#allocation2 + $0x1c] sm:$0xf]
      %v524 = vld [vmem:[#allocation2 + $0x20] sm:$0xf]
      %v525 = vld [vmem:[#allocation2 + $0x24] sm:$0xf]
      %v526 = vld [vmem:[#allocation2 + $0x28] sm:$0xf]
      %v527 = vld [vmem:[#allocation2 + $0x2c] sm:$0xf]
      %v528 = vld [vmem:[#allocation2 + $0x30] sm:$0xf]
      %v529 = vld [vmem:[#allocation2 + $0x34] sm:$0xf]
      %v530 = vld [vmem:[#allocation2 + $0x38] sm:$0xf]
      %v531 = vld [vmem:[#allocation2 + $0x3c] sm:$0xf]
      %v532 = vld [vmem:[%s318] sm:$0xff]
      %v533 = vld [vmem:[%s318 + $0x8] sm:$0xff]
      %v534 = vld [vmem:[%s318 + $0x10] sm:$0xff]
      %v535 = vld [vmem:[%s318 + $0x18] sm:$0xff]
      %v536 = vld [vmem:[%s318 + $0x20] sm:$0xff]
      %v537 = vld [vmem:[%s318 + $0x28] sm:$0xff]
      %v538 = vld [vmem:[%s318 + $0x30] sm:$0xff]
      %v539 = vld [vmem:[%s318 + $0x38] sm:$0xff]
      %v540 = vld [vmem:[%s318 + $0x40] sm:$0xff]
      %v541 = vld [vmem:[%s318 + $0x48] sm:$0xff]
      %v542 = vld [vmem:[%s318 + $0x50] sm:$0xff]
      %v543 = vld [vmem:[%s318 + $0x58] sm:$0xff]
      %v544 = vld [vmem:[%s318 + $0x60] sm:$0xff]
      %v545 = vld [vmem:[%s318 + $0x68] sm:$0xff]
      %v546 = vld [vmem:[%s318 + $0x70] sm:$0xff]
      %v547 = vld [vmem:[%s318 + $0x78] sm:$0xff]
      %v548 = vpack.c.bf16 %v533, %v532
      %v549 = vpack.c.bf16 %v535, %v534
      %v550 = vpack.c.bf16 %v537, %v536
      %v551 = vpack.c.bf16 %v539, %v538
      %v552 = vpack.c.bf16 %v541, %v540
      %v553 = vpack.c.bf16 %v543, %v542
      %v554 = vpack.c.bf16 %v545, %v544
      %v555 = vpack.c.bf16 %v547, %v546
      %v556 = vld [vmem:[%s332] sm:$0xff]
      %v557 = vld [vmem:[%s332 + $0x8] sm:$0xff]
      %v558 = vld [vmem:[%s332 + $0x10] sm:$0xff]
      %v559 = vld [vmem:[%s332 + $0x18] sm:$0xff]
      %v560 = vld [vmem:[%s332 + $0x20] sm:$0xff]
      %v561 = vld [vmem:[%s332 + $0x28] sm:$0xff]
      %v562 = vld [vmem:[%s332 + $0x30] sm:$0xff]
      %v563 = vld [vmem:[%s332 + $0x38] sm:$0xff]
      %v564 = vld [vmem:[%s332 + $0x40] sm:$0xff]
      %v565 = vld [vmem:[%s332 + $0x48] sm:$0xff]
      %v566 = vld [vmem:[%s332 + $0x50] sm:$0xff]
      %v567 = vld [vmem:[%s332 + $0x58] sm:$0xff]
      %v568 = vld [vmem:[%s332 + $0x60] sm:$0xff]
      %v569 = vld [vmem:[%s332 + $0x68] sm:$0xff]
      %v570 = vld [vmem:[%s332 + $0x70] sm:$0xff]
      %v571 = vld [vmem:[%s332 + $0x78] sm:$0xff]
      %v572 = vpack.c.bf16 %v557, %v556
      %v573 = vpack.c.bf16 %v559, %v558
      %v574 = vpack.c.bf16 %v561, %v560
      %v575 = vpack.c.bf16 %v563, %v562
      %v576 = vpack.c.bf16 %v565, %v564
      %v577 = vpack.c.bf16 %v567, %v566
      %v578 = vpack.c.bf16 %v569, %v568
      %v579 = vpack.c.bf16 %v571, %v570
      %v596 = vunpack.c.l.b16 %v516
      %v597 = vunpack.c.l.b16 %v517
      %v598 = vunpack.c.l.b16 %v518
      %v599 = vunpack.c.l.b16 %v519
      %v600 = vunpack.c.l.b16 %v520
      %v601 = vunpack.c.l.b16 %v521
      %v602 = vunpack.c.l.b16 %v522
      %v603 = vunpack.c.l.b16 %v523
      %v604 = vunpack.c.l.b16 %v524
      %v605 = vunpack.c.l.b16 %v525
      %v606 = vunpack.c.l.b16 %v526
      %v607 = vunpack.c.l.b16 %v527
      %v608 = vunpack.c.l.b16 %v528
      %v609 = vunpack.c.l.b16 %v529
      %v610 = vunpack.c.l.b16 %v530
      %v611 = vunpack.c.l.b16 %v531
      %v612 = vpack.c.b16 %v597, %v596
      %v613 = vpack.c.b16 %v599, %v598
      %v614 = vpack.c.b16 %v601, %v600
      %v615 = vpack.c.b16 %v603, %v602
      %v616 = vpack.c.b16 %v605, %v604
      %v617 = vpack.c.b16 %v607, %v606
      %v618 = vpack.c.b16 %v609, %v608
      %v619 = vpack.c.b16 %v611, %v610
      %vm620 = vcmask 261120
      %v622 = vsel %vm620, %v612, 0
      %v625 = vsel %vm620, %v613, 0
      %v628 = vsel %vm620, %v614, 0
      %v631 = vsel %vm620, %v615, 0
      %v634 = vsel %vm620, %v616, 0
      %v637 = vsel %vm620, %v617, 0
      %v640 = vsel %vm620, %v618, 0
      %v643 = vsel %vm620, %v619, 0
      %v646 = vsel %vm620, %v548, 0
      %v649 = vsel %vm620, %v549, 0
      %v652 = vsel %vm620, %v550, 0
      %v655 = vsel %vm620, %v551, 0
      %v658 = vsel %vm620, %v552, 0
      %v661 = vsel %vm620, %v553, 0
      %v664 = vsel %vm620, %v554, 0
      %v667 = vsel %vm620, %v555, 0
      %669 = vmatprep.subr.bf16.mxu0 0
      %670 = vmatpush1.bf16.xpose.msra.mxu0 %v667
      %671 = vmatprep.subr.bf16.mxu0 0
      %672 = vmatpush1.bf16.xpose.msra.mxu0 %v664
      %673 = vmatprep.subr.bf16.mxu0 0
      %674 = vmatpush1.bf16.xpose.msra.mxu0 %v661
      %675 = vmatprep.subr.bf16.mxu0 0
      %676 = vmatpush1.bf16.xpose.msra.mxu0 %v658
      %677 = vmatprep.subr.bf16.mxu0 0
      %678 = vmatpush1.bf16.xpose.msra.mxu0 %v655
      %679 = vmatprep.subr.bf16.mxu0 0
      %680 = vmatpush1.bf16.xpose.msra.mxu0 %v652
      %681 = vmatprep.subr.bf16.mxu0 0
      %682 = vmatpush1.bf16.xpose.msra.mxu0 %v649
      %683 = vmatprep.subr.bf16.mxu0 0
      %684 = vmatpush1.bf16.xpose.msra.mxu0 %v646
      %685 = vmatprep.subr.bf16.mxu0 0
      %686 = vmatpush2.bf16.xpose.msra.mxu0 0
      %687 = vmatprep.subr.bf16.mxu0 0
      %688 = vmatpush2.bf16.xpose.msra.mxu0 0
      %689 = vmatprep.subr.bf16.mxu0 0
      %690 = vmatpush2.bf16.xpose.msra.mxu0 0
      %691 = vmatprep.subr.bf16.mxu0 0
      %692 = vmatpush2.bf16.xpose.msra.mxu0 0
      %693 = vmatprep.subr.bf16.mxu0 0
      %694 = vmatpush2.bf16.xpose.msra.mxu0 0
      %695 = vmatprep.subr.bf16.mxu0 0
      %696 = vmatpush2.bf16.xpose.msra.mxu0 0
      %697 = vmatprep.subr.bf16.mxu0 0
      %698 = vmatpush2.bf16.xpose.msra.mxu0 0
      %699 = vmatprep.subr.bf16.mxu0 0
      %700 = vmatpush2.bf16.xpose.msra.mxu0 0
      %701 = vmatprep.mubr.bf16.mxu0 0
      %702 = vmatmul.mubr.bf16.gmra.mxu0 %v622
      %v703 = vpop.f32.mrf.mxu0
      %v704 = vadd.f32 0.0, %v703
      %v705 = vpop.f32.mrf.mxu0
      %v706 = vpop.f32.mrf.mxu0
      %v707 = vadd.f32 0.0, %v706
      %v708 = vpop.f32.mrf.mxu0
      %709 = vmatprep.mubr.bf16.mxu0 0
      %710 = vmatmul.mubr.bf16.gmra.mxu0 %v625
      %v711 = vpop.f32.mrf.mxu0
      %v712 = vadd.f32 0.0, %v711
      %v713 = vpop.f32.mrf.mxu0
      %v714 = vpop.f32.mrf.mxu0
      %v715 = vadd.f32 0.0, %v714
      %v716 = vpop.f32.mrf.mxu0
      %717 = vmatprep.mubr.bf16.mxu0 0
      %718 = vmatmul.mubr.bf16.gmra.mxu0 %v628
      %v719 = vpop.f32.mrf.mxu0
      %v720 = vadd.f32 0.0, %v719
      %v721 = vpop.f32.mrf.mxu0
      %v722 = vpop.f32.mrf.mxu0
      %v723 = vadd.f32 0.0, %v722
      %v724 = vpop.f32.mrf.mxu0
      %725 = vmatprep.mubr.bf16.mxu0 0
      %726 = vmatmul.mubr.bf16.gmra.mxu0 %v631
      %v727 = vpop.f32.mrf.mxu0
      %v728 = vadd.f32 0.0, %v727
      %v729 = vpop.f32.mrf.mxu0
      %v730 = vpop.f32.mrf.mxu0
      %v731 = vadd.f32 0.0, %v730
      %v732 = vpop.f32.mrf.mxu0
      %733 = vmatprep.mubr.bf16.mxu0 0
      %734 = vmatmul.mubr.bf16.gmra.mxu0 %v634
      %v735 = vpop.f32.mrf.mxu0
      %v736 = vadd.f32 0.0, %v735
      %v737 = vpop.f32.mrf.mxu0
      %v738 = vpop.f32.mrf.mxu0
      %v739 = vadd.f32 0.0, %v738
      %v740 = vpop.f32.mrf.mxu0
      %741 = vmatprep.mubr.bf16.mxu0 0
      %742 = vmatmul.mubr.bf16.gmra.mxu0 %v637
      %v743 = vpop.f32.mrf.mxu0
      %v744 = vadd.f32 0.0, %v743
      %v745 = vpop.f32.mrf.mxu0
      %v746 = vpop.f32.mrf.mxu0
      %v747 = vadd.f32 0.0, %v746
      %v748 = vpop.f32.mrf.mxu0
      %749 = vmatprep.mubr.bf16.mxu0 0
      %750 = vmatmul.mubr.bf16.gmra.mxu0 %v640
      %v751 = vpop.f32.mrf.mxu0
      %v752 = vadd.f32 0.0, %v751
      %v753 = vpop.f32.mrf.mxu0
      %v754 = vpop.f32.mrf.mxu0
      %v755 = vadd.f32 0.0, %v754
      %v756 = vpop.f32.mrf.mxu0
      %757 = vmatprep.mubr.bf16.mxu0 0
      %758 = vmatmul.mubr.bf16.gmra.mxu0 %v643
      %v759 = vpop.f32.mrf.mxu0
      %v760 = vadd.f32 0.0, %v759
      %v761 = vpop.f32.mrf.mxu0
      %v762 = vpop.f32.mrf.mxu0
      %v763 = vadd.f32 0.0, %v762
      %v764 = vpop.f32.mrf.mxu0
      %765 = vdwg.mxu0
      %v766 = vld [vmem:[#allocation3] sm:$0xff]
      %v767 = vld [vmem:[#allocation3 + $0x8] sm:$0xff]
      %v768 = vld [vmem:[#allocation3 + $0x10] sm:$0xff]
      %v769 = vld [vmem:[#allocation3 + $0x18] sm:$0xff]
      %v770 = vld [vmem:[#allocation3 + $0x20] sm:$0xff]
      %v771 = vld [vmem:[#allocation3 + $0x28] sm:$0xff]
      %v772 = vld [vmem:[#allocation3 + $0x30] sm:$0xff]
      %v773 = vld [vmem:[#allocation3 + $0x38] sm:$0xff]
      %v774 = vld [vmem:[#allocation3 + $0x40] sm:$0xff]
      %v775 = vld [vmem:[#allocation3 + $0x48] sm:$0xff]
      %v776 = vld [vmem:[#allocation3 + $0x50] sm:$0xff]
      %v777 = vld [vmem:[#allocation3 + $0x58] sm:$0xff]
      %v778 = vld [vmem:[#allocation3 + $0x60] sm:$0xff]
      %v779 = vld [vmem:[#allocation3 + $0x68] sm:$0xff]
      %v780 = vld [vmem:[#allocation3 + $0x70] sm:$0xff]
      %v781 = vld [vmem:[#allocation3 + $0x78] sm:$0xff]
      %782 = vmax.xlane.f32.xlu0 %v704
      %v783 = vpop.xlane.xlu0 %782
      %784 = vmax.xlane.f32.xlu0 %v707
      %v785 = vpop.xlane.xlu0 %784
      %786 = vmax.xlane.f32.xlu0 %v712
      %v787 = vpop.xlane.xlu0 %786
      %788 = vmax.xlane.f32.xlu0 %v715
      %v789 = vpop.xlane.xlu0 %788
      %790 = vmax.xlane.f32.xlu0 %v720
      %v791 = vpop.xlane.xlu0 %790
      %792 = vmax.xlane.f32.xlu0 %v723
      %v793 = vpop.xlane.xlu0 %792
      %794 = vmax.xlane.f32.xlu0 %v728
      %v795 = vpop.xlane.xlu0 %794
      %796 = vmax.xlane.f32.xlu0 %v731
      %v797 = vpop.xlane.xlu0 %796
      %798 = vmax.xlane.f32.xlu0 %v736
      %v799 = vpop.xlane.xlu0 %798
      %800 = vmax.xlane.f32.xlu0 %v739
      %v801 = vpop.xlane.xlu0 %800
      %802 = vmax.xlane.f32.xlu0 %v744
      %v803 = vpop.xlane.xlu0 %802
      %804 = vmax.xlane.f32.xlu0 %v747
      %v805 = vpop.xlane.xlu0 %804
      %806 = vmax.xlane.f32.xlu0 %v752
      %v807 = vpop.xlane.xlu0 %806
      %808 = vmax.xlane.f32.xlu0 %v755
      %v809 = vpop.xlane.xlu0 %808
      %810 = vmax.xlane.f32.xlu0 %v760
      %v811 = vpop.xlane.xlu0 %810
      %812 = vmax.xlane.f32.xlu0 %v763
      %v813 = vpop.xlane.xlu0 %812
      %v814 = vmax.f32 %v766, %v783
      %v815 = vmax.f32 %v767, %v785
      %v816 = vmax.f32 %v768, %v787
      %v817 = vmax.f32 %v769, %v789
      %v818 = vmax.f32 %v770, %v791
      %v819 = vmax.f32 %v771, %v793
      %v820 = vmax.f32 %v772, %v795
      %v821 = vmax.f32 %v773, %v797
      %v822 = vmax.f32 %v774, %v799
      %v823 = vmax.f32 %v775, %v801
      %v824 = vmax.f32 %v776, %v803
      %v825 = vmax.f32 %v777, %v805
      %v826 = vmax.f32 %v778, %v807
      %v827 = vmax.f32 %v779, %v809
      %v828 = vmax.f32 %v780, %v811
      %v829 = vmax.f32 %v781, %v813
      %v830 = vsub.f32 %v766, %v814
      %v831 = vsub.f32 %v767, %v815
      %v832 = vsub.f32 %v768, %v816
      %v833 = vsub.f32 %v769, %v817
      %v834 = vsub.f32 %v770, %v818
      %v835 = vsub.f32 %v771, %v819
      %v836 = vsub.f32 %v772, %v820
      %v837 = vsub.f32 %v773, %v821
      %v838 = vsub.f32 %v774, %v822
      %v839 = vsub.f32 %v775, %v823
      %v840 = vsub.f32 %v776, %v824
      %v841 = vsub.f32 %v777, %v825
      %v842 = vsub.f32 %v778, %v826
      %v843 = vsub.f32 %v779, %v827
      %v844 = vsub.f32 %v780, %v828
      %v845 = vsub.f32 %v781, %v829
      %v846 = vmul.f32 %v830, 1.442695
      %v847 = vpow.pop %v846
      %v848 = vmul.f32 %v831, 1.442695
      %v849 = vpow.pop %v848
      %v850 = vmul.f32 %v832, 1.442695
      %v851 = vpow.pop %v850
      %v852 = vmul.f32 %v833, 1.442695
      %v853 = vpow.pop %v852
      %v854 = vmul.f32 %v834, 1.442695
      %v855 = vpow.pop %v854
      %v856 = vmul.f32 %v835, 1.442695
      %v857 = vpow.pop %v856
      %v858 = vmul.f32 %v836, 1.442695
      %v859 = vpow.pop %v858
      %v860 = vmul.f32 %v837, 1.442695
      %v861 = vpow.pop %v860
      %v862 = vmul.f32 %v838, 1.442695
      %v863 = vpow.pop %v862
      %v864 = vmul.f32 %v839, 1.442695
      %v865 = vpow.pop %v864
      %v866 = vmul.f32 %v840, 1.442695
      %v867 = vpow.pop %v866
      %v868 = vmul.f32 %v841, 1.442695
      %v869 = vpow.pop %v868
      %v870 = vmul.f32 %v842, 1.442695
      %v871 = vpow.pop %v870
      %v872 = vmul.f32 %v843, 1.442695
      %v873 = vpow.pop %v872
      %v874 = vmul.f32 %v844, 1.442695
      %v875 = vpow.pop %v874
      %v876 = vmul.f32 %v845, 1.442695
      %v877 = vpow.pop %v876
      %879 = vset.pattern.permute.xlu0 0
      %880 = vperm.xlu0 %879, %v814
      %v881 = vpop.permute.xlu0 %880
      %884 = vset.pattern.permute.xlu0 0
      %885 = vperm.xlu0 %884, %v815
      %v886 = vpop.permute.xlu0 %885
      %889 = vset.pattern.permute.xlu0 0
      %890 = vperm.xlu0 %889, %v816
      %v891 = vpop.permute.xlu0 %890
      %894 = vset.pattern.permute.xlu0 0
      %895 = vperm.xlu0 %894, %v817
      %v896 = vpop.permute.xlu0 %895
      %899 = vset.pattern.permute.xlu0 0
      %900 = vperm.xlu0 %899, %v818
      %v901 = vpop.permute.xlu0 %900
      %904 = vset.pattern.permute.xlu0 0
      %905 = vperm.xlu0 %904, %v819
      %v906 = vpop.permute.xlu0 %905
      %909 = vset.pattern.permute.xlu0 0
      %910 = vperm.xlu0 %909, %v820
      %v911 = vpop.permute.xlu0 %910
      %914 = vset.pattern.permute.xlu0 0
      %915 = vperm.xlu0 %914, %v821
      %v916 = vpop.permute.xlu0 %915
      %919 = vset.pattern.permute.xlu0 0
      %920 = vperm.xlu0 %919, %v822
      %v921 = vpop.permute.xlu0 %920
      %924 = vset.pattern.permute.xlu0 0
      %925 = vperm.xlu0 %924, %v823
      %v926 = vpop.permute.xlu0 %925
      %929 = vset.pattern.permute.xlu0 0
      %930 = vperm.xlu0 %929, %v824
      %v931 = vpop.permute.xlu0 %930
      %934 = vset.pattern.permute.xlu0 0
      %935 = vperm.xlu0 %934, %v825
      %v936 = vpop.permute.xlu0 %935
      %939 = vset.pattern.permute.xlu0 0
      %940 = vperm.xlu0 %939, %v826
      %v941 = vpop.permute.xlu0 %940
      %944 = vset.pattern.permute.xlu0 0
      %945 = vperm.xlu0 %944, %v827
      %v946 = vpop.permute.xlu0 %945
      %949 = vset.pattern.permute.xlu0 0
      %950 = vperm.xlu0 %949, %v828
      %v951 = vpop.permute.xlu0 %950
      %954 = vset.pattern.permute.xlu0 0
      %955 = vperm.xlu0 %954, %v829
      %v956 = vpop.permute.xlu0 %955
      %v958 = vsub.f32 %v704, %v881
      %v959 = vsub.f32 %v707, %v886
      %v960 = vsub.f32 %v712, %v891
      %v961 = vsub.f32 %v715, %v896
      %v962 = vsub.f32 %v720, %v901
      %v963 = vsub.f32 %v723, %v906
      %v964 = vsub.f32 %v728, %v911
      %v965 = vsub.f32 %v731, %v916
      %v966 = vsub.f32 %v736, %v921
      %v967 = vsub.f32 %v739, %v926
      %v968 = vsub.f32 %v744, %v931
      %v969 = vsub.f32 %v747, %v936
      %v970 = vsub.f32 %v752, %v941
      %v971 = vsub.f32 %v755, %v946
      %v972 = vsub.f32 %v760, %v951
      %v973 = vsub.f32 %v763, %v956
      %v974 = vmul.f32 %v958, 1.442695
      %v975 = vpow.pop %v974
      %v976 = vmul.f32 %v959, 1.442695
      %v977 = vpow.pop %v976
      %v978 = vmul.f32 %v960, 1.442695
      %v979 = vpow.pop %v978
      %v980 = vmul.f32 %v961, 1.442695
      %v981 = vpow.pop %v980
      %v982 = vmul.f32 %v962, 1.442695
      %v983 = vpow.pop %v982
      %v984 = vmul.f32 %v963, 1.442695
      %v985 = vpow.pop %v984
      %v986 = vmul.f32 %v964, 1.442695
      %v987 = vpow.pop %v986
      %v988 = vmul.f32 %v965, 1.442695
      %v989 = vpow.pop %v988
      %v990 = vmul.f32 %v966, 1.442695
      %v991 = vpow.pop %v990
      %v992 = vmul.f32 %v967, 1.442695
      %v993 = vpow.pop %v992
      %v994 = vmul.f32 %v968, 1.442695
      %v995 = vpow.pop %v994
      %v996 = vmul.f32 %v969, 1.442695
      %v997 = vpow.pop %v996
      %v998 = vmul.f32 %v970, 1.442695
      %v999 = vpow.pop %v998
      %v1000 = vmul.f32 %v971, 1.442695
      %v1001 = vpow.pop %v1000
      %v1002 = vmul.f32 %v972, 1.442695
      %v1003 = vpow.pop %v1002
      %v1004 = vmul.f32 %v973, 1.442695
      %v1005 = vpow.pop %v1004
      %v1006 = vld [vmem:[#allocation4] sm:$0xff]
      %v1007 = vld [vmem:[#allocation4 + $0x8] sm:$0xff]
      %v1008 = vld [vmem:[#allocation4 + $0x10] sm:$0xff]
      %v1009 = vld [vmem:[#allocation4 + $0x18] sm:$0xff]
      %v1010 = vld [vmem:[#allocation4 + $0x20] sm:$0xff]
      %v1011 = vld [vmem:[#allocation4 + $0x28] sm:$0xff]
      %v1012 = vld [vmem:[#allocation4 + $0x30] sm:$0xff]
      %v1013 = vld [vmem:[#allocation4 + $0x38] sm:$0xff]
      %v1014 = vld [vmem:[#allocation4 + $0x40] sm:$0xff]
      %v1015 = vld [vmem:[#allocation4 + $0x48] sm:$0xff]
      %v1016 = vld [vmem:[#allocation4 + $0x50] sm:$0xff]
      %v1017 = vld [vmem:[#allocation4 + $0x58] sm:$0xff]
      %v1018 = vld [vmem:[#allocation4 + $0x60] sm:$0xff]
      %v1019 = vld [vmem:[#allocation4 + $0x68] sm:$0xff]
      %v1020 = vld [vmem:[#allocation4 + $0x70] sm:$0xff]
      %v1021 = vld [vmem:[#allocation4 + $0x78] sm:$0xff]
      %v1022 = vmul.f32 %v847, %v1006
      %v1023 = vmul.f32 %v849, %v1007
      %v1024 = vmul.f32 %v851, %v1008
      %v1025 = vmul.f32 %v853, %v1009
      %v1026 = vmul.f32 %v855, %v1010
      %v1027 = vmul.f32 %v857, %v1011
      %v1028 = vmul.f32 %v859, %v1012
      %v1029 = vmul.f32 %v861, %v1013
      %v1030 = vmul.f32 %v863, %v1014
      %v1031 = vmul.f32 %v865, %v1015
      %v1032 = vmul.f32 %v867, %v1016
      %v1033 = vmul.f32 %v869, %v1017
      %v1034 = vmul.f32 %v871, %v1018
      %v1035 = vmul.f32 %v873, %v1019
      %v1036 = vmul.f32 %v875, %v1020
      %v1037 = vmul.f32 %v877, %v1021
      %1038 = vadd.xlane.f32.xlu0 %v975
      %v1039 = vpop.xlane.xlu0 %1038
      %1040 = vadd.xlane.f32.xlu0 %v977
      %v1041 = vpop.xlane.xlu0 %1040
      %1042 = vadd.xlane.f32.xlu0 %v979
      %v1043 = vpop.xlane.xlu0 %1042
      %1044 = vadd.xlane.f32.xlu0 %v981
      %v1045 = vpop.xlane.xlu0 %1044
      %1046 = vadd.xlane.f32.xlu0 %v983
      %v1047 = vpop.xlane.xlu0 %1046
      %1048 = vadd.xlane.f32.xlu0 %v985
      %v1049 = vpop.xlane.xlu0 %1048
      %1050 = vadd.xlane.f32.xlu0 %v987
      %v1051 = vpop.xlane.xlu0 %1050
      %1052 = vadd.xlane.f32.xlu0 %v989
      %v1053 = vpop.xlane.xlu0 %1052
      %1054 = vadd.xlane.f32.xlu0 %v991
      %v1055 = vpop.xlane.xlu0 %1054
      %1056 = vadd.xlane.f32.xlu0 %v993
      %v1057 = vpop.xlane.xlu0 %1056
      %1058 = vadd.xlane.f32.xlu0 %v995
      %v1059 = vpop.xlane.xlu0 %1058
      %1060 = vadd.xlane.f32.xlu0 %v997
      %v1061 = vpop.xlane.xlu0 %1060
      %1062 = vadd.xlane.f32.xlu0 %v999
      %v1063 = vpop.xlane.xlu0 %1062
      %1064 = vadd.xlane.f32.xlu0 %v1001
      %v1065 = vpop.xlane.xlu0 %1064
      %1066 = vadd.xlane.f32.xlu0 %v1003
      %v1067 = vpop.xlane.xlu0 %1066
      %1068 = vadd.xlane.f32.xlu0 %v1005
      %v1069 = vpop.xlane.xlu0 %1068
      %v1070 = vadd.f32 %v1022, %v1039
      %v1071 = vadd.f32 %v1023, %v1041
      %v1072 = vadd.f32 %v1024, %v1043
      %v1073 = vadd.f32 %v1025, %v1045
      %v1074 = vadd.f32 %v1026, %v1047
      %v1075 = vadd.f32 %v1027, %v1049
      %v1076 = vadd.f32 %v1028, %v1051
      %v1077 = vadd.f32 %v1029, %v1053
      %v1078 = vadd.f32 %v1030, %v1055
      %v1079 = vadd.f32 %v1031, %v1057
      %v1080 = vadd.f32 %v1032, %v1059
      %v1081 = vadd.f32 %v1033, %v1061
      %v1082 = vadd.f32 %v1034, %v1063
      %v1083 = vadd.f32 %v1035, %v1065
      %v1084 = vadd.f32 %v1036, %v1067
      %v1085 = vadd.f32 %v1037, %v1069
      %v1086 = vadd.f32 %v1070, 1e-10
      %v1087 = vadd.f32 %v1071, 1e-10
      %v1088 = vadd.f32 %v1072, 1e-10
      %v1089 = vadd.f32 %v1073, 1e-10
      %v1090 = vadd.f32 %v1074, 1e-10
      %v1091 = vadd.f32 %v1075, 1e-10
      %v1092 = vadd.f32 %v1076, 1e-10
      %v1093 = vadd.f32 %v1077, 1e-10
      %v1094 = vadd.f32 %v1078, 1e-10
      %v1095 = vadd.f32 %v1079, 1e-10
      %v1096 = vadd.f32 %v1080, 1e-10
      %v1097 = vadd.f32 %v1081, 1e-10
      %v1098 = vadd.f32 %v1082, 1e-10
      %v1099 = vadd.f32 %v1083, 1e-10
      %v1100 = vadd.f32 %v1084, 1e-10
      %v1101 = vadd.f32 %v1085, 1e-10
      %vm1102 = vcmask 7168
      %1103 = vst.msk [vmem:[#allocation4] sm:$0xff] %vm1102, %v1086
      %1104 = vst.msk [vmem:[#allocation4 + $0x8] sm:$0xff] %vm1102, %v1087
      %1105 = vst.msk [vmem:[#allocation4 + $0x10] sm:$0xff] %vm1102, %v1088
      %1106 = vst.msk [vmem:[#allocation4 + $0x18] sm:$0xff] %vm1102, %v1089
      %1107 = vst.msk [vmem:[#allocation4 + $0x20] sm:$0xff] %vm1102, %v1090
      %1108 = vst.msk [vmem:[#allocation4 + $0x28] sm:$0xff] %vm1102, %v1091
      %1109 = vst.msk [vmem:[#allocation4 + $0x30] sm:$0xff] %vm1102, %v1092
      %1110 = vst.msk [vmem:[#allocation4 + $0x38] sm:$0xff] %vm1102, %v1093
      %1111 = vst.msk [vmem:[#allocation4 + $0x40] sm:$0xff] %vm1102, %v1094
      %1112 = vst.msk [vmem:[#allocation4 + $0x48] sm:$0xff] %vm1102, %v1095
      %1113 = vst.msk [vmem:[#allocation4 + $0x50] sm:$0xff] %vm1102, %v1096
      %1114 = vst.msk [vmem:[#allocation4 + $0x58] sm:$0xff] %vm1102, %v1097
      %1115 = vst.msk [vmem:[#allocation4 + $0x60] sm:$0xff] %vm1102, %v1098
      %1116 = vst.msk [vmem:[#allocation4 + $0x68] sm:$0xff] %vm1102, %v1099
      %1117 = vst.msk [vmem:[#allocation4 + $0x70] sm:$0xff] %vm1102, %v1100
      %1118 = vst.msk [vmem:[#allocation4 + $0x78] sm:$0xff] %vm1102, %v1101
      %v1119 = vld [vmem:[#allocation5] sm:$0xff]
      %v1120 = vld [vmem:[#allocation5 + $0x8] sm:$0xff]
      %v1121 = vld [vmem:[#allocation5 + $0x10] sm:$0xff]
      %v1122 = vld [vmem:[#allocation5 + $0x18] sm:$0xff]
      %v1123 = vld [vmem:[#allocation5 + $0x20] sm:$0xff]
      %v1124 = vld [vmem:[#allocation5 + $0x28] sm:$0xff]
      %v1125 = vld [vmem:[#allocation5 + $0x30] sm:$0xff]
      %v1126 = vld [vmem:[#allocation5 + $0x38] sm:$0xff]
      %v1127 = vld [vmem:[#allocation5 + $0x40] sm:$0xff]
      %v1128 = vld [vmem:[#allocation5 + $0x48] sm:$0xff]
      %v1129 = vld [vmem:[#allocation5 + $0x50] sm:$0xff]
      %v1130 = vld [vmem:[#allocation5 + $0x58] sm:$0xff]
      %v1131 = vld [vmem:[#allocation5 + $0x60] sm:$0xff]
      %v1132 = vld [vmem:[#allocation5 + $0x68] sm:$0xff]
      %v1133 = vld [vmem:[#allocation5 + $0x70] sm:$0xff]
      %v1134 = vld [vmem:[#allocation5 + $0x78] sm:$0xff]
      %1136 = vset.pattern.permute.xlu0 0
      %1137 = vperm.xlu0 %1136, %v847
      %v1138 = vpop.permute.xlu0 %1137
      %1141 = vset.pattern.permute.xlu0 0
      %1142 = vperm.xlu0 %1141, %v849
      %v1143 = vpop.permute.xlu0 %1142
      %1146 = vset.pattern.permute.xlu0 0
      %1147 = vperm.xlu0 %1146, %v851
      %v1148 = vpop.permute.xlu0 %1147
      %1151 = vset.pattern.permute.xlu0 0
      %1152 = vperm.xlu0 %1151, %v853
      %v1153 = vpop.permute.xlu0 %1152
      %1156 = vset.pattern.permute.xlu0 0
      %1157 = vperm.xlu0 %1156, %v855
      %v1158 = vpop.permute.xlu0 %1157
      %1161 = vset.pattern.permute.xlu0 0
      %1162 = vperm.xlu0 %1161, %v857
      %v1163 = vpop.permute.xlu0 %1162
      %1166 = vset.pattern.permute.xlu0 0
      %1167 = vperm.xlu0 %1166, %v859
      %v1168 = vpop.permute.xlu0 %1167
      %1171 = vset.pattern.permute.xlu0 0
      %1172 = vperm.xlu0 %1171, %v861
      %v1173 = vpop.permute.xlu0 %1172
      %1176 = vset.pattern.permute.xlu0 0
      %1177 = vperm.xlu0 %1176, %v863
      %v1178 = vpop.permute.xlu0 %1177
      %1181 = vset.pattern.permute.xlu0 0
      %1182 = vperm.xlu0 %1181, %v865
      %v1183 = vpop.permute.xlu0 %1182
      %1186 = vset.pattern.permute.xlu0 0
      %1187 = vperm.xlu0 %1186, %v867
      %v1188 = vpop.permute.xlu0 %1187
      %1191 = vset.pattern.permute.xlu0 0
      %1192 = vperm.xlu0 %1191, %v869
      %v1193 = vpop.permute.xlu0 %1192
      %1196 = vset.pattern.permute.xlu0 0
      %1197 = vperm.xlu0 %1196, %v871
      %v1198 = vpop.permute.xlu0 %1197
      %1201 = vset.pattern.permute.xlu0 0
      %1202 = vperm.xlu0 %1201, %v873
      %v1203 = vpop.permute.xlu0 %1202
      %1206 = vset.pattern.permute.xlu0 0
      %1207 = vperm.xlu0 %1206, %v875
      %v1208 = vpop.permute.xlu0 %1207
      %1211 = vset.pattern.permute.xlu0 0
      %1212 = vperm.xlu0 %1211, %v877
      %v1213 = vpop.permute.xlu0 %1212
      %v1215 = vmul.f32 %v1138, %v1119
      %v1216 = vmul.f32 %v1143, %v1120
      %v1217 = vmul.f32 %v1148, %v1121
      %v1218 = vmul.f32 %v1153, %v1122
      %v1219 = vmul.f32 %v1158, %v1123
      %v1220 = vmul.f32 %v1163, %v1124
      %v1221 = vmul.f32 %v1168, %v1125
      %v1222 = vmul.f32 %v1173, %v1126
      %v1223 = vmul.f32 %v1178, %v1127
      %v1224 = vmul.f32 %v1183, %v1128
      %v1225 = vmul.f32 %v1188, %v1129
      %v1226 = vmul.f32 %v1193, %v1130
      %v1227 = vmul.f32 %v1198, %v1131
      %v1228 = vmul.f32 %v1203, %v1132
      %v1229 = vmul.f32 %v1208, %v1133
      %v1230 = vmul.f32 %v1213, %v1134
      %v1231 = vpack.c.bf16 %v977, %v975
      %v1232 = vpack.c.bf16 %v981, %v979
      %v1233 = vpack.c.bf16 %v985, %v983
      %v1234 = vpack.c.bf16 %v989, %v987
      %v1235 = vpack.c.bf16 %v993, %v991
      %v1236 = vpack.c.bf16 %v997, %v995
      %v1237 = vpack.c.bf16 %v1001, %v999
      %v1238 = vpack.c.bf16 %v1005, %v1003
      %1239 = vmatprep.subr.bf16.mxu0 0
      %1240 = vmatpush1.bf16.msra.mxu0 %v579
      %1241 = vmatprep.subr.bf16.mxu0 0
      %1242 = vmatpush1.bf16.msra.mxu0 %v578
      %1243 = vmatprep.subr.bf16.mxu0 0
      %1244 = vmatpush1.bf16.msra.mxu0 %v577
      %1245 = vmatprep.subr.bf16.mxu0 0
      %1246 = vmatpush1.bf16.msra.mxu0 %v576
      %1247 = vmatprep.subr.bf16.mxu0 0
      %1248 = vmatpush1.bf16.msra.mxu0 %v575
      %1249 = vmatprep.subr.bf16.mxu0 0
      %1250 = vmatpush1.bf16.msra.mxu0 %v574
      %1251 = vmatprep.subr.bf16.mxu0 0
      %1252 = vmatpush1.bf16.msra.mxu0 %v573
      %1253 = vmatprep.subr.bf16.mxu0 0
      %1254 = vmatpush1.bf16.msra.mxu0 %v572
      %1255 = vmatprep.subr.bf16.mxu0 0
      %1256 = vmatpush2.bf16.msra.mxu0 0
      %1257 = vmatprep.subr.bf16.mxu0 0
      %1258 = vmatpush2.bf16.msra.mxu0 0
      %1259 = vmatprep.subr.bf16.mxu0 0
      %1260 = vmatpush2.bf16.msra.mxu0 0
      %1261 = vmatprep.subr.bf16.mxu0 0
      %1262 = vmatpush2.bf16.msra.mxu0 0
      %1263 = vmatprep.subr.bf16.mxu0 0
      %1264 = vmatpush2.bf16.msra.mxu0 0
      %1265 = vmatprep.subr.bf16.mxu0 0
      %1266 = vmatpush2.bf16.msra.mxu0 0
      %1267 = vmatprep.subr.bf16.mxu0 0
      %1268 = vmatpush2.bf16.msra.mxu0 0
      %1269 = vmatprep.subr.bf16.mxu0 0
      %1270 = vmatpush2.bf16.msra.mxu0 0
      %1271 = vmatprep.mubr.bf16.mxu0 0
      %1272 = vmatmul.mubr.bf16.gmra.mxu0 %v1231
      %v1273 = vpop.f32.mrf.mxu0
      %v1274 = vadd.f32 0.0, %v1273
      %v1275 = vpop.f32.mrf.mxu0
      %v1276 = vpop.f32.mrf.mxu0
      %v1277 = vadd.f32 0.0, %v1276
      %v1278 = vpop.f32.mrf.mxu0
      %1279 = vmatprep.mubr.bf16.mxu0 0
      %1280 = vmatmul.mubr.bf16.gmra.mxu0 %v1232
      %v1281 = vpop.f32.mrf.mxu0
      %v1282 = vadd.f32 0.0, %v1281
      %v1283 = vpop.f32.mrf.mxu0
      %v1284 = vpop.f32.mrf.mxu0
      %v1285 = vadd.f32 0.0, %v1284
      %v1286 = vpop.f32.mrf.mxu0
      %1287 = vmatprep.mubr.bf16.mxu0 0
      %1288 = vmatmul.mubr.bf16.gmra.mxu0 %v1233
      %v1289 = vpop.f32.mrf.mxu0
      %v1290 = vadd.f32 0.0, %v1289
      %v1291 = vpop.f32.mrf.mxu0
      %v1292 = vpop.f32.mrf.mxu0
      %v1293 = vadd.f32 0.0, %v1292
      %v1294 = vpop.f32.mrf.mxu0
      %1295 = vmatprep.mubr.bf16.mxu0 0
      %1296 = vmatmul.mubr.bf16.gmra.mxu0 %v1234
      %v1297 = vpop.f32.mrf.mxu0
      %v1298 = vadd.f32 0.0, %v1297
      %v1299 = vpop.f32.mrf.mxu0
      %v1300 = vpop.f32.mrf.mxu0
      %v1301 = vadd.f32 0.0, %v1300
      %v1302 = vpop.f32.mrf.mxu0
      %1303 = vmatprep.mubr.bf16.mxu0 0
      %1304 = vmatmul.mubr.bf16.gmra.mxu0 %v1235
      %v1305 = vpop.f32.mrf.mxu0
      %v1306 = vadd.f32 0.0, %v1305
      %v1307 = vpop.f32.mrf.mxu0
      %v1308 = vpop.f32.mrf.mxu0
      %v1309 = vadd.f32 0.0, %v1308
      %v1310 = vpop.f32.mrf.mxu0
      %1311 = vmatprep.mubr.bf16.mxu0 0
      %1312 = vmatmul.mubr.bf16.gmra.mxu0 %v1236
      %v1313 = vpop.f32.mrf.mxu0
      %v1314 = vadd.f32 0.0, %v1313
      %v1315 = vpop.f32.mrf.mxu0
      %v1316 = vpop.f32.mrf.mxu0
      %v1317 = vadd.f32 0.0, %v1316
      %v1318 = vpop.f32.mrf.mxu0
      %1319 = vmatprep.mubr.bf16.mxu0 0
      %1320 = vmatmul.mubr.bf16.gmra.mxu0 %v1237
      %v1321 = vpop.f32.mrf.mxu0
      %v1322 = vadd.f32 0.0, %v1321
      %v1323 = vpop.f32.mrf.mxu0
      %v1324 = vpop.f32.mrf.mxu0
      %v1325 = vadd.f32 0.0, %v1324
      %v1326 = vpop.f32.mrf.mxu0
      %1327 = vmatprep.mubr.bf16.mxu0 0
      %1328 = vmatmul.mubr.bf16.gmra.mxu0 %v1238
      %v1329 = vpop.f32.mrf.mxu0
      %v1330 = vadd.f32 0.0, %v1329
      %v1331 = vpop.f32.mrf.mxu0
      %v1332 = vpop.f32.mrf.mxu0
      %v1333 = vadd.f32 0.0, %v1332
      %v1334 = vpop.f32.mrf.mxu0
      %1335 = vdwg.mxu0
      %v1336 = vadd.f32 %v1215, %v1274
      %v1337 = vadd.f32 %v1216, %v1277
      %v1338 = vadd.f32 %v1217, %v1282
      %v1339 = vadd.f32 %v1218, %v1285
      %v1340 = vadd.f32 %v1219, %v1290
      %v1341 = vadd.f32 %v1220, %v1293
      %v1342 = vadd.f32 %v1221, %v1298
      %v1343 = vadd.f32 %v1222, %v1301
      %v1344 = vadd.f32 %v1223, %v1306
      %v1345 = vadd.f32 %v1224, %v1309
      %v1346 = vadd.f32 %v1225, %v1314
      %v1347 = vadd.f32 %v1226, %v1317
      %v1348 = vadd.f32 %v1227, %v1322
      %v1349 = vadd.f32 %v1228, %v1325
      %v1350 = vadd.f32 %v1229, %v1330
      %v1351 = vadd.f32 %v1230, %v1333
      %1352 = vst.msk [vmem:[#allocation5] sm:$0xff] %vm620, %v1336
      %1353 = vst.msk [vmem:[#allocation5 + $0x8] sm:$0xff] %vm620, %v1337
      %1354 = vst.msk [vmem:[#allocation5 + $0x10] sm:$0xff] %vm620, %v1338
      %1355 = vst.msk [vmem:[#allocation5 + $0x18] sm:$0xff] %vm620, %v1339
      %1356 = vst.msk [vmem:[#allocation5 + $0x20] sm:$0xff] %vm620, %v1340
      %1357 = vst.msk [vmem:[#allocation5 + $0x28] sm:$0xff] %vm620, %v1341
      %1358 = vst.msk [vmem:[#allocation5 + $0x30] sm:$0xff] %vm620, %v1342
      %1359 = vst.msk [vmem:[#allocation5 + $0x38] sm:$0xff] %vm620, %v1343
      %1360 = vst.msk [vmem:[#allocation5 + $0x40] sm:$0xff] %vm620, %v1344
      %1361 = vst.msk [vmem:[#allocation5 + $0x48] sm:$0xff] %vm620, %v1345
      %1362 = vst.msk [vmem:[#allocation5 + $0x50] sm:$0xff] %vm620, %v1346
      %1363 = vst.msk [vmem:[#allocation5 + $0x58] sm:$0xff] %vm620, %v1347
      %1364 = vst.msk [vmem:[#allocation5 + $0x60] sm:$0xff] %vm620, %v1348
      %1365 = vst.msk [vmem:[#allocation5 + $0x68] sm:$0xff] %vm620, %v1349
      %1366 = vst.msk [vmem:[#allocation5 + $0x70] sm:$0xff] %vm620, %v1350
      %1367 = vst.msk [vmem:[#allocation5 + $0x78] sm:$0xff] %vm620, %v1351
      %1368 = vst.msk [vmem:[#allocation3] sm:$0xff] %vm1102, %v814
      %1369 = vst.msk [vmem:[#allocation3 + $0x8] sm:$0xff] %vm1102, %v815
      %1370 = vst.msk [vmem:[#allocation3 + $0x10] sm:$0xff] %vm1102, %v816
      %1371 = vst.msk [vmem:[#allocation3 + $0x18] sm:$0xff] %vm1102, %v817
      %1372 = vst.msk [vmem:[#allocation3 + $0x20] sm:$0xff] %vm1102, %v818
      %1373 = vst.msk [vmem:[#allocation3 + $0x28] sm:$0xff] %vm1102, %v819
      %1374 = vst.msk [vmem:[#allocation3 + $0x30] sm:$0xff] %vm1102, %v820
      %1375 = vst.msk [vmem:[#allocation3 + $0x38] sm:$0xff] %vm1102, %v821
      %1376 = vst.msk [vmem:[#allocation3 + $0x40] sm:$0xff] %vm1102, %v822
      %1377 = vst.msk [vmem:[#allocation3 + $0x48] sm:$0xff] %vm1102, %v823
      %1378 = vst.msk [vmem:[#allocation3 + $0x50] sm:$0xff] %vm1102, %v824
      %1379 = vst.msk [vmem:[#allocation3 + $0x58] sm:$0xff] %vm1102, %v825
      %1380 = vst.msk [vmem:[#allocation3 + $0x60] sm:$0xff] %vm1102, %v826
      %1381 = vst.msk [vmem:[#allocation3 + $0x68] sm:$0xff] %vm1102, %v827
      %1382 = vst.msk [vmem:[#allocation3 + $0x70] sm:$0xff] %vm1102, %v828
      %1383 = vst.msk [vmem:[#allocation3 + $0x78] sm:$0xff] %vm1102, %v829
      // Predicated region
      $region37: #{tpu_custom_call.1} parent=31 // pred_check
        %p1384 = pneg %p349
      $region38: #{tpu_custom_call.1} parent=31 // pred_check_branch
        %1386 = sbr.rel (%p1384) target = $region40
      $region39: #{tpu_custom_call.1} parent=31 // pred_region
        %v1387 = vld [vmem:[#allocation4] sm:$0xff]
        %v1388 = vld [vmem:[#allocation4 + $0x8] sm:$0xff]
        %v1389 = vld [vmem:[#allocation4 + $0x10] sm:$0xff]
        %v1390 = vld [vmem:[#allocation4 + $0x18] sm:$0xff]
        %v1391 = vld [vmem:[#allocation4 + $0x20] sm:$0xff]
        %v1392 = vld [vmem:[#allocation4 + $0x28] sm:$0xff]
        %v1393 = vld [vmem:[#allocation4 + $0x30] sm:$0xff]
        %v1394 = vld [vmem:[#allocation4 + $0x38] sm:$0xff]
        %v1395 = vld [vmem:[#allocation4 + $0x40] sm:$0xff]
        %v1396 = vld [vmem:[#allocation4 + $0x48] sm:$0xff]
        %v1397 = vld [vmem:[#allocation4 + $0x50] sm:$0xff]
        %v1398 = vld [vmem:[#allocation4 + $0x58] sm:$0xff]
        %v1399 = vld [vmem:[#allocation4 + $0x60] sm:$0xff]
        %v1400 = vld [vmem:[#allocation4 + $0x68] sm:$0xff]
        %v1401 = vld [vmem:[#allocation4 + $0x70] sm:$0xff]
        %v1402 = vld [vmem:[#allocation4 + $0x78] sm:$0xff]
        %v1403 = vrcp.pop %v1387
        %v1404 = vrcp.pop %v1388
        %v1405 = vrcp.pop %v1389
        %v1406 = vrcp.pop %v1390
        %v1407 = vrcp.pop %v1391
        %v1408 = vrcp.pop %v1392
        %v1409 = vrcp.pop %v1393
        %v1410 = vrcp.pop %v1394
        %v1411 = vrcp.pop %v1395
        %v1412 = vrcp.pop %v1396
        %v1413 = vrcp.pop %v1397
        %v1414 = vrcp.pop %v1398
        %v1415 = vrcp.pop %v1399
        %v1416 = vrcp.pop %v1400
        %v1417 = vrcp.pop %v1401
        %v1418 = vrcp.pop %v1402
        %v1419 = vmul.f32 %v1387, %v1403
        %v1420 = vmul.f32 %v1388, %v1404
        %v1421 = vmul.f32 %v1389, %v1405
        %v1422 = vmul.f32 %v1390, %v1406
        %v1423 = vmul.f32 %v1391, %v1407
        %v1424 = vmul.f32 %v1392, %v1408
        %v1425 = vmul.f32 %v1393, %v1409
        %v1426 = vmul.f32 %v1394, %v1410
        %v1427 = vmul.f32 %v1395, %v1411
        %v1428 = vmul.f32 %v1396, %v1412
        %v1429 = vmul.f32 %v1397, %v1413
        %v1430 = vmul.f32 %v1398, %v1414
        %v1431 = vmul.f32 %v1399, %v1415
        %v1432 = vmul.f32 %v1400, %v1416
        %v1433 = vmul.f32 %v1401, %v1417
        %v1434 = vmul.f32 %v1402, %v1418
        %v1435 = vsub.f32 2.0, %v1419
        %v1436 = vsub.f32 2.0, %v1420
        %v1437 = vsub.f32 2.0, %v1421
        %v1438 = vsub.f32 2.0, %v1422
        %v1439 = vsub.f32 2.0, %v1423
        %v1440 = vsub.f32 2.0, %v1424
        %v1441 = vsub.f32 2.0, %v1425
        %v1442 = vsub.f32 2.0, %v1426
        %v1443 = vsub.f32 2.0, %v1427
        %v1444 = vsub.f32 2.0, %v1428
        %v1445 = vsub.f32 2.0, %v1429
        %v1446 = vsub.f32 2.0, %v1430
        %v1447 = vsub.f32 2.0, %v1431
        %v1448 = vsub.f32 2.0, %v1432
        %v1449 = vsub.f32 2.0, %v1433
        %v1450 = vsub.f32 2.0, %v1434
        %v1451 = vmul.f32 %v1403, %v1435
        %v1452 = vmul.f32 %v1404, %v1436
        %v1453 = vmul.f32 %v1405, %v1437
        %v1454 = vmul.f32 %v1406, %v1438
        %v1455 = vmul.f32 %v1407, %v1439
        %v1456 = vmul.f32 %v1408, %v1440
        %v1457 = vmul.f32 %v1409, %v1441
        %v1458 = vmul.f32 %v1410, %v1442
        %v1459 = vmul.f32 %v1411, %v1443
        %v1460 = vmul.f32 %v1412, %v1444
        %v1461 = vmul.f32 %v1413, %v1445
        %v1462 = vmul.f32 %v1414, %v1446
        %v1463 = vmul.f32 %v1415, %v1447
        %v1464 = vmul.f32 %v1416, %v1448
        %v1465 = vmul.f32 %v1417, %v1449
        %v1466 = vmul.f32 %v1418, %v1450
        %v1467 = vld [vmem:[#allocation5] sm:$0xff]
        %v1468 = vld [vmem:[#allocation5 + $0x8] sm:$0xff]
        %v1469 = vld [vmem:[#allocation5 + $0x10] sm:$0xff]
        %v1470 = vld [vmem:[#allocation5 + $0x18] sm:$0xff]
        %v1471 = vld [vmem:[#allocation5 + $0x20] sm:$0xff]
        %v1472 = vld [vmem:[#allocation5 + $0x28] sm:$0xff]
        %v1473 = vld [vmem:[#allocation5 + $0x30] sm:$0xff]
        %v1474 = vld [vmem:[#allocation5 + $0x38] sm:$0xff]
        %v1475 = vld [vmem:[#allocation5 + $0x40] sm:$0xff]
        %v1476 = vld [vmem:[#allocation5 + $0x48] sm:$0xff]
        %v1477 = vld [vmem:[#allocation5 + $0x50] sm:$0xff]
        %v1478 = vld [vmem:[#allocation5 + $0x58] sm:$0xff]
        %v1479 = vld [vmem:[#allocation5 + $0x60] sm:$0xff]
        %v1480 = vld [vmem:[#allocation5 + $0x68] sm:$0xff]
        %v1481 = vld [vmem:[#allocation5 + $0x70] sm:$0xff]
        %v1482 = vld [vmem:[#allocation5 + $0x78] sm:$0xff]
        %1484 = vset.pattern.permute.xlu0 0
        %1485 = vperm.xlu0 %1484, %v1451
        %v1486 = vpop.permute.xlu0 %1485
        %1489 = vset.pattern.permute.xlu0 0
        %1490 = vperm.xlu0 %1489, %v1452
        %v1491 = vpop.permute.xlu0 %1490
        %1494 = vset.pattern.permute.xlu0 0
        %1495 = vperm.xlu0 %1494, %v1453
        %v1496 = vpop.permute.xlu0 %1495
        %1499 = vset.pattern.permute.xlu0 0
        %1500 = vperm.xlu0 %1499, %v1454
        %v1501 = vpop.permute.xlu0 %1500
        %1504 = vset.pattern.permute.xlu0 0
        %1505 = vperm.xlu0 %1504, %v1455
        %v1506 = vpop.permute.xlu0 %1505
        %1509 = vset.pattern.permute.xlu0 0
        %1510 = vperm.xlu0 %1509, %v1456
        %v1511 = vpop.permute.xlu0 %1510
        %1514 = vset.pattern.permute.xlu0 0
        %1515 = vperm.xlu0 %1514, %v1457
        %v1516 = vpop.permute.xlu0 %1515
        %1519 = vset.pattern.permute.xlu0 0
        %1520 = vperm.xlu0 %1519, %v1458
        %v1521 = vpop.permute.xlu0 %1520
        %1524 = vset.pattern.permute.xlu0 0
        %1525 = vperm.xlu0 %1524, %v1459
        %v1526 = vpop.permute.xlu0 %1525
        %1529 = vset.pattern.permute.xlu0 0
        %1530 = vperm.xlu0 %1529, %v1460
        %v1531 = vpop.permute.xlu0 %1530
        %1534 = vset.pattern.permute.xlu0 0
        %1535 = vperm.xlu0 %1534, %v1461
        %v1536 = vpop.permute.xlu0 %1535
        %1539 = vset.pattern.permute.xlu0 0
        %1540 = vperm.xlu0 %1539, %v1462
        %v1541 = vpop.permute.xlu0 %1540
        %1544 = vset.pattern.permute.xlu0 0
        %1545 = vperm.xlu0 %1544, %v1463
        %v1546 = vpop.permute.xlu0 %1545
        %1549 = vset.pattern.permute.xlu0 0
        %1550 = vperm.xlu0 %1549, %v1464
        %v1551 = vpop.permute.xlu0 %1550
        %1554 = vset.pattern.permute.xlu0 0
        %1555 = vperm.xlu0 %1554, %v1465
        %v1556 = vpop.permute.xlu0 %1555
        %1559 = vset.pattern.permute.xlu0 0
        %1560 = vperm.xlu0 %1559, %v1466
        %v1561 = vpop.permute.xlu0 %1560
        %v1563 = vmul.f32 %v1467, %v1486
        %v1564 = vmul.f32 %v1468, %v1491
        %v1565 = vmul.f32 %v1469, %v1496
        %v1566 = vmul.f32 %v1470, %v1501
        %v1567 = vmul.f32 %v1471, %v1506
        %v1568 = vmul.f32 %v1472, %v1511
        %v1569 = vmul.f32 %v1473, %v1516
        %v1570 = vmul.f32 %v1474, %v1521
        %v1571 = vmul.f32 %v1475, %v1526
        %v1572 = vmul.f32 %v1476, %v1531
        %v1573 = vmul.f32 %v1477, %v1536
        %v1574 = vmul.f32 %v1478, %v1541
        %v1575 = vmul.f32 %v1479, %v1546
        %v1576 = vmul.f32 %v1480, %v1551
        %v1577 = vmul.f32 %v1481, %v1556
        %v1578 = vmul.f32 %v1482, %v1561
        %1579 = vst.msk [vmem:[%s346] sm:$0xff] %vm620, %v1563
        %1580 = vst.msk [vmem:[%s346 + $0x8] sm:$0xff] %vm620, %v1564
        %1581 = vst.msk [vmem:[%s346 + $0x10] sm:$0xff] %vm620, %v1565
        %1582 = vst.msk [vmem:[%s346 + $0x18] sm:$0xff] %vm620, %v1566
        %1583 = vst.msk [vmem:[%s346 + $0x20] sm:$0xff] %vm620, %v1567
        %1584 = vst.msk [vmem:[%s346 + $0x28] sm:$0xff] %vm620, %v1568
        %1585 = vst.msk [vmem:[%s346 + $0x30] sm:$0xff] %vm620, %v1569
        %1586 = vst.msk [vmem:[%s346 + $0x38] sm:$0xff] %vm620, %v1570
        %1587 = vst.msk [vmem:[%s346 + $0x40] sm:$0xff] %vm620, %v1571
        %1588 = vst.msk [vmem:[%s346 + $0x48] sm:$0xff] %vm620, %v1572
        %1589 = vst.msk [vmem:[%s346 + $0x50] sm:$0xff] %vm620, %v1573
        %1590 = vst.msk [vmem:[%s346 + $0x58] sm:$0xff] %vm620, %v1574
        %1591 = vst.msk [vmem:[%s346 + $0x60] sm:$0xff] %vm620, %v1575
        %1592 = vst.msk [vmem:[%s346 + $0x68] sm:$0xff] %vm620, %v1576
        %1593 = vst.msk [vmem:[%s346 + $0x70] sm:$0xff] %vm620, %v1577
        %1594 = vst.msk [vmem:[%s346 + $0x78] sm:$0xff] %vm620, %v1578
      $region40: #{tpu_custom_call.1} parent=31 // pred_fallthru
        _
      %s1595 = smul.u32 16, %s22
      %p1596 = scmp.lt.s32.totalorder %s20, 1
      %s1597 = scalar_select %p1596, %s20, 1
      %p1598 = scmp.lt.s32.totalorder %s21, 1
      %s1599 = scalar_select %p1598, %s21, 1
      %p1600 = scmp.lt.s32.totalorder %s1595, 15
      %s1601 = scalar_select %p1600, %s1595, 15
      %s1602 = smul.addr %s1599, 16
      %s1603 = sadd.s32 %s1601, %s1602
      %s1604 = smul.addr %s1597, 32
      %s1605 = sadd.s32 %s1603, %s1604
      %s1606 = smul.addr %s1605, 8
      %s1607 = scalar_lea.vmem %s3, %s1606
      // Predicated region
      $region41: #{tpu_custom_call.1} parent=31 // pred_check
        %p1608 = pneg %p152
      $region42: #{tpu_custom_call.1} parent=31 // pred_check_branch
        %1610 = sbr.rel (%p1608) target = $region44
      $region43: #{tpu_custom_call.1} parent=31 // pred_region
        %s1611 = smul.u32 16, %s22
      $region44: #{tpu_custom_call.1} parent=31 // pred_fallthru
        _
    $region32: #{tpu_custom_call.1} parent=5 // pred_fallthru
      _
    %p1612 = scmp.le.s32.totalorder 2, %s9
    // Predicated region
    $region45: #{tpu_custom_call.1} parent=5 // pred_check
      %p1613 = pneg %p1612
    $region46: #{tpu_custom_call.1} parent=5 // pred_check_branch
      %1615 = sbr.rel (%p1613) target = $region48
    $region47: #{tpu_custom_call.1} parent=5 // pred_region
      %s1616 = ssub.s32 %s9, 2
      // Predicated region
      $region49: #{tpu_custom_call.1} parent=47 // pred_check
        %p1617 = pneg %p158
      $region50: #{tpu_custom_call.1} parent=47 // pred_check_branch
        %1619 = sbr.rel (%p1617) target = $region52
      $region51: #{tpu_custom_call.1} parent=47 // pred_region
        %s1620 = smul.u32 16, %s26
        %p1621 = scmp.lt.s32.totalorder %s24, 1
        %s1622 = scalar_select %p1621, %s24, 1
        %p1623 = scmp.lt.s32.totalorder %s25, 1
        %s1624 = scalar_select %p1623, %s25, 1
        %p1625 = scmp.lt.s32.totalorder %s1620, 15
        %s1626 = scalar_select %p1625, %s1620, 15
        %s1627 = smul.addr %s1624, 16
        %s1628 = sadd.s32 %s1626, %s1627
        %s1629 = smul.addr %s1622, 32
        %s1630 = sadd.s32 %s1628, %s1629
        %s1631 = smul.addr %s1630, 8
        %s1632 = scalar_lea.vmem %s3, %s1631
      $region52: #{tpu_custom_call.1} parent=47 // pred_fallthru
        _
    $region48: #{tpu_custom_call.1} parent=5 // pred_fallthru
      _
  $region6: #{tpu_custom_call.1} parent=0 // loop_footer
    %s13 = sadd.s32 1, %s9
  $region7: #{tpu_custom_call.1} parent=0 // loop_footer_branch
    %8 = sbr.rel target = $region3
  $region8: #{tpu_custom_call.1} parent=0 // loop_exit
    _

</llo_original>
